<compile_context>
chip_gen: v5e
topology: v5e:2x2
jax: 0.10.0
libtpu: 0.0.40
codegen_flags: <defaults>
</compile_context>

<pallas_src>
import math

import jax
import jax.numpy as jnp
from jax.experimental import pallas as pl
from jax.experimental.pallas import tpu as pltpu

INPUT_SIZE = 1
HIDDEN = 32
NUM_LAYERS = 2
NUM_DIRECTIONS = 2
OUTPUT_DIM = 1


def _interleave_gates(a_f, a_r):
    """Interleave two (..., 4H) gate-major (i,f,g,o) arrays into (..., 8H) with
    column blocks ordered [i_f, i_r, f_f, f_r, g_f, g_r, o_f, o_r]."""
    H = HIDDEN
    lead = a_f.shape[:-1]
    af = a_f.reshape(lead + (4, H))
    ar = a_r.reshape(lead + (4, H))
    return jnp.stack([af, ar], axis=-2).reshape(lead + (8 * H,))


def _bilstm_kernel(gx0_ref, w1_ref, b1_ref, whh_ref, h0_ref, c0_ref,
                   wout_ref, bout_ref,
                   outs_ref, hn_ref, cn_ref,
                   l0nf, l0nr, l0rf, l0rr, gx1_scr, l1f, l1r):
    """Fused 2-layer bidirectional LSTM + output Linear.

    Shapes (f32):
      gx0   (T*B, 8H)   precomputed layer-0 gate inputs (time-aligned, interleaved)
      w1    (4H, 8H)    layer-1 input weights (rows: [nat_f|nat_r|rev_f|rev_r])
      b1    (1, 8H)     layer-1 combined biases
      whh   (2, 2H, 8H) block-diagonal recurrent weights per layer
      h0/c0 (2, B, 2H)  packed initial states [fwd | rev] per layer
      wout  (1, 2H), bout (1, 1)
      outs  (T*B, 1), hn/cn (2, B, 2H)
      scratch: l0nf/l0nr/l0rf/l0rr (T*B, H)  layer-0 outputs (natural / reversed time)
               gx1_scr (T*B, 8H)             layer-1 precomputed gate inputs
               l1f/l1r (T*B, H)              top-layer outputs
    """
    H = HIDDEN
    B = h0_ref.shape[1]
    T = gx0_ref.shape[0] // B

    def run_layer(gx_ref, layer, nat_f, nat_r, rev_f=None, rev_r=None):
        whh = whh_ref[layer]              # (2H, 8H), loaded once per layer
        h = h0_ref[layer]                 # (B, 2H) = [h_fwd | h_rev]
        c = c0_ref[layer]
        for s in range(T):                # fully unrolled; fwd walks s, rev walks T-1-s
            rs = T - 1 - s
            gates = gx_ref[s * B:(s + 1) * B, :] + jnp.dot(
                h, whh, preferred_element_type=jnp.float32)        # (B, 8H)
            sg = jax.nn.sigmoid(gates)                             # i, f, o full width
            g = jnp.tanh(gates[:, 4 * H:6 * H])
            i = sg[:, 0:2 * H]
            f = sg[:, 2 * H:4 * H]
            o = sg[:, 6 * H:8 * H]
            c = f * c + i * g
            h = o * jnp.tanh(c)
            # natural-time layer outputs (fwd result is for time s, rev for time T-1-s)
            nat_f[s * B:(s + 1) * B, :] = h[:, 0:H]
            nat_r[rs * B:(rs + 1) * B, :] = h[:, H:2 * H]
            if rev_f is not None:
                # time-reversed copies, consumed by the next layer's reverse direction
                rev_f[rs * B:(rs + 1) * B, :] = h[:, 0:H]
                rev_r[s * B:(s + 1) * B, :] = h[:, H:2 * H]
        hn_ref[layer] = h                 # [h_fwd(T-1) | h_rev(0)]  (PyTorch h_n layout)
        cn_ref[layer] = c

    # ---- layer 0 (input projection + bias precomputed in the wrapper) ----
    run_layer(gx0_ref, 0, l0nf, l0nr, l0rf, l0rr)

    # ---- layer-1 input projection for ALL timesteps: one MXU matmul ----
    l0 = jnp.concatenate([l0nf[...], l0nr[...], l0rf[...], l0rr[...]], axis=-1)
    gx1_scr[...] = jnp.dot(l0, w1_ref[...],
                           preferred_element_type=jnp.float32) + b1_ref[...]

    # ---- layer 1 ----
    run_layer(gx1_scr, 1, l1f, l1r)

    # ---- output Linear(2H -> 1): VPU multiply + lane reduce (no concats) ----
    wout = wout_ref[...]                                           # (1, 2H)
    y = (jnp.sum(l1f[...] * wout[:, 0:H], axis=-1, keepdims=True)
         + jnp.sum(l1r[...] * wout[:, H:2 * H], axis=-1, keepdims=True)
         + bout_ref[...])
    outs_ref[...] = y


@jax.jit
def rnn_gru_lstm_forward(x, h0, c0, params):
    """x: (B, T, 1) batch_first.  Returns (outs (B,T,1), h_n (4,B,H), c_n (4,B,H))."""
    H = HIDDEN
    B, T, _ = x.shape
    w_ih, w_hh = params['w_ih'], params['w_hh']
    b_ih, b_hh = params['b_ih'], params['b_hh']
    z14 = jnp.zeros((1, 4 * H), jnp.float32)
    zH4 = jnp.zeros((H, 4 * H), jnp.float32)
    z2H4 = jnp.zeros((2 * H, 4 * H), jnp.float32)

    # layer-0 input rows (input_size == 1 -> broadcast multiply) and biases
    wih0_f = _interleave_gates(w_ih[0].T, z14)            # (1, 8H) fwd columns only
    wih0_r = _interleave_gates(z14, w_ih[1].T)            # (1, 8H) rev columns only
    b0 = _interleave_gates((b_ih[0] + b_hh[0])[None, :],
                           (b_ih[1] + b_hh[1])[None, :])  # (1, 8H)

    # layer-1 input weights: K rows ordered [nat_f | nat_r | rev_f | rev_r]
    w1 = jnp.concatenate([_interleave_gates(w_ih[2].T, z2H4),
                          _interleave_gates(z2H4, w_ih[3].T)], axis=0)   # (4H, 8H)
    b1 = _interleave_gates((b_ih[2] + b_hh[2])[None, :],
                           (b_ih[3] + b_hh[3])[None, :])                 # (1, 8H)

    # block-diagonal recurrent weights per layer (rows map [h_fwd | h_rev])
    whh = jnp.stack([
        jnp.concatenate([_interleave_gates(w_hh[2 * L].T, zH4),
                         _interleave_gates(zH4, w_hh[2 * L + 1].T)], axis=0)
        for L in range(NUM_LAYERS)])                                     # (2, 2H, 8H)

    # layer-0 gate inputs for all T, time-aligned for the fused fwd/rev loop:
    # row s holds proj(x[s]) in fwd columns and proj(x[T-1-s]) in rev columns.
    x_tm = jnp.transpose(x, (1, 0, 2))                                   # (T, B, 1)
    gx0 = (x_tm * wih0_f + x_tm[::-1] * wih0_r + b0).reshape(T * B, 8 * H)

    # packed initial states [fwd | rev] per layer
    h0p = jnp.concatenate([h0[0::2], h0[1::2]], axis=-1)                 # (2, B, 2H)
    c0p = jnp.concatenate([c0[0::2], c0[1::2]], axis=-1)

    wout = params['w_out']                                               # (1, 2H)
    bout = params['b_out'].reshape(1, 1)

    vmem = pl.BlockSpec(memory_space=pltpu.MemorySpace.VMEM)
    outs2d, hnp, cnp = pl.pallas_call(
        _bilstm_kernel,
        out_shape=(
            jax.ShapeDtypeStruct((T * B, OUTPUT_DIM), jnp.float32),
            jax.ShapeDtypeStruct((NUM_LAYERS, B, 2 * H), jnp.float32),
            jax.ShapeDtypeStruct((NUM_LAYERS, B, 2 * H), jnp.float32),
        ),
        in_specs=[vmem] * 8,
        out_specs=(vmem, vmem, vmem),
        scratch_shapes=[
            pltpu.VMEM((T * B, H), jnp.float32),       # layer-0 fwd outputs (natural time)
            pltpu.VMEM((T * B, H), jnp.float32),       # layer-0 rev outputs (natural time)
            pltpu.VMEM((T * B, H), jnp.float32),       # layer-0 fwd outputs (reversed time)
            pltpu.VMEM((T * B, H), jnp.float32),       # layer-0 rev outputs (reversed time)
            pltpu.VMEM((T * B, 8 * H), jnp.float32),   # layer-1 precomputed gate inputs
            pltpu.VMEM((T * B, H), jnp.float32),       # layer-1 fwd outputs
            pltpu.VMEM((T * B, H), jnp.float32),       # layer-1 rev outputs
        ],
    )(gx0, w1, b1, whh, h0p, c0p, wout, bout)

    outs = jnp.transpose(outs2d.reshape(T, B, OUTPUT_DIM), (1, 0, 2))    # (B, T, 1)
    hn = jnp.stack([hnp[:, :, :H], hnp[:, :, H:]], axis=1).reshape(
        NUM_LAYERS * NUM_DIRECTIONS, B, H)
    cn = jnp.stack([cnp[:, :, :H], cnp[:, :, H:]], axis=1).reshape(
        NUM_LAYERS * NUM_DIRECTIONS, B, H)
    return outs, hn, cn


def init_params(key):
    """Deterministic PyTorch-style uniform(-1/sqrt(H), 1/sqrt(H)) init (raw layout)."""
    H = HIDDEN
    bound = 1.0 / math.sqrt(H)
    keys = iter(jax.random.split(key, 18))

    def u(shape):
        return jax.random.uniform(next(keys), shape, jnp.float32, -bound, bound)

    w_ih, w_hh, b_ih, b_hh = [], [], [], []
    for layer in range(NUM_LAYERS):
        in_dim = INPUT_SIZE if layer == 0 else NUM_DIRECTIONS * H
        for _d in range(NUM_DIRECTIONS):
            w_ih.append(u((4 * H, in_dim)))
            w_hh.append(u((4 * H, H)))
            b_ih.append(u((4 * H,)))
            b_hh.append(u((4 * H,)))
    return dict(w_ih=w_ih, w_hh=w_hh, b_ih=b_ih, b_hh=b_hh,
                w_out=u((OUTPUT_DIM, NUM_DIRECTIONS * H)),
                b_out=u((OUTPUT_DIM,)))


def lstm_ref(x, h0, c0, p):
    """Pure-JAX reference mirroring nn.LSTM(bidirectional=True) + nn.Linear."""
    B, T, _ = x.shape
    H = HIDDEN
    hn, cn = [], []
    layer_in = x
    for layer in range(NUM_LAYERS):
        dir_outs = []
        for d in range(NUM_DIRECTIONS):
            idx = layer * NUM_DIRECTIONS + d
            w_ih_t = p['w_ih'][idx].T
            w_hh_t = p['w_hh'][idx].T
            b = (p['b_ih'][idx] + p['b_hh'][idx])[None, :]
            h, c = h0[idx], c0[idx]
            hs = [None] * T
            order = range(T) if d == 0 else range(T - 1, -1, -1)
            for t in order:
                gates = layer_in[:, t, :] @ w_ih_t + h @ w_hh_t + b
                i = jax.nn.sigmoid(gates[:, 0:H])
                f = jax.nn.sigmoid(gates[:, H:2 * H])
                g = jnp.tanh(gates[:, 2 * H:3 * H])
                o = jax.nn.sigmoid(gates[:, 3 * H:4 * H])
                c = f * c + i * g
                h = o * jnp.tanh(c)
                hs[t] = h
            dir_outs.append(jnp.stack(hs, axis=1))
            hn.append(h)
            cn.append(c)
        layer_in = jnp.concatenate(dir_outs, axis=-1)
    outs = layer_in @ p['w_out'].T + p['b_out'].reshape(1, 1, 1)
    return outs, jnp.stack(hn), jnp.stack(cn)


if __name__ == "__main__":
    key = jax.random.PRNGKey(0)
    k_x, k_h, k_c, k_p = jax.random.split(key, 4)

    B, T = 1, 8                                   # batch=1 as in the module
    x = jax.random.normal(k_x, (B, T, INPUT_SIZE), jnp.float32)
    # module default is zero states; use small random states to exercise that path too
    h0 = 0.1 * jax.random.normal(k_h, (NUM_LAYERS * NUM_DIRECTIONS, B, HIDDEN), jnp.float32)
    c0 = 0.1 * jax.random.normal(k_c, (NUM_LAYERS * NUM_DIRECTIONS, B, HIDDEN), jnp.float32)
    p = init_params(k_p)

    outs, hn, cn = rnn_gru_lstm_forward(x, h0, c0, p)
    jax.block_until_ready((outs, hn, cn))

    outs_r, hn_r, cn_r = lstm_ref(x, h0, c0, p)
    assert outs.shape == (B, T, OUTPUT_DIM)
    assert hn.shape == (NUM_LAYERS * NUM_DIRECTIONS, B, HIDDEN)
    assert cn.shape == (NUM_LAYERS * NUM_DIRECTIONS, B, HIDDEN)
    assert jnp.allclose(outs, outs_r, atol=2e-3, rtol=2e-2)
    assert jnp.allclose(hn, hn_r, atol=2e-3, rtol=2e-2)
    assert jnp.allclose(cn, cn_r, atol=2e-3, rtol=2e-2)

    print("KERNEL_OK")
</pallas_src>

<mosaic_0001>
module attributes {stable_mosaic.version = 11 : i64} {
  func.func @_bilstm_kernel(%arg0: memref<8x256xf32, #tpu.memory_space<vmem>>, %arg1: memref<128x256xf32, #tpu.memory_space<vmem>>, %arg2: memref<1x256xf32, #tpu.memory_space<vmem>>, %arg3: memref<2x64x256xf32, #tpu.memory_space<vmem>>, %arg4: memref<2x1x64xf32, #tpu.memory_space<vmem>>, %arg5: memref<2x1x64xf32, #tpu.memory_space<vmem>>, %arg6: memref<1x64xf32, #tpu.memory_space<vmem>>, %arg7: memref<1x1xf32, #tpu.memory_space<vmem>>, %arg8: memref<8x1xf32, #tpu.memory_space<vmem>>, %arg9: memref<2x1x64xf32, #tpu.memory_space<vmem>>, %arg10: memref<2x1x64xf32, #tpu.memory_space<vmem>>, %arg11: memref<8x32xf32, #tpu.memory_space<vmem>>, %arg12: memref<8x32xf32, #tpu.memory_space<vmem>>, %arg13: memref<8x32xf32, #tpu.memory_space<vmem>>, %arg14: memref<8x32xf32, #tpu.memory_space<vmem>>, %arg15: memref<8x256xf32, #tpu.memory_space<vmem>>, %arg16: memref<8x32xf32, #tpu.memory_space<vmem>>, %arg17: memref<8x32xf32, #tpu.memory_space<vmem>>) attributes {dimension_semantics = [], scalar_prefetch = 0 : i64, scratch_operands = 7 : i64, tpu.core_type = #tpu.core_type<tc>} {
    %c0 = arith.constant 0 : index
    %c0_0 = arith.constant 0 : index
    %c0_1 = arith.constant 0 : index
    %0 = vector.load %arg3[%c0, %c0_0, %c0_1] : memref<2x64x256xf32, #tpu.memory_space<vmem>>, vector<1x64x256xf32>
    %1 = vector.shape_cast %0 : vector<1x64x256xf32> to vector<64x256xf32>
    %c0_2 = arith.constant 0 : index
    %c0_3 = arith.constant 0 : index
    %c0_4 = arith.constant 0 : index
    %2 = vector.load %arg4[%c0_2, %c0_3, %c0_4] : memref<2x1x64xf32, #tpu.memory_space<vmem>>, vector<1x1x64xf32>
    %3 = vector.shape_cast %2 : vector<1x1x64xf32> to vector<1x64xf32>
    %c0_5 = arith.constant 0 : index
    %c0_6 = arith.constant 0 : index
    %c0_7 = arith.constant 0 : index
    %4 = vector.load %arg5[%c0_5, %c0_6, %c0_7] : memref<2x1x64xf32, #tpu.memory_space<vmem>>, vector<1x1x64xf32>
    %5 = vector.shape_cast %4 : vector<1x1x64xf32> to vector<1x64xf32>
    %c0_8 = arith.constant 0 : index
    %c0_9 = arith.constant 0 : index
    %6 = vector.load %arg0[%c0_8, %c0_9] : memref<8x256xf32, #tpu.memory_space<vmem>>, vector<1x256xf32>
    %cst = arith.constant dense<0.000000e+00> : vector<1x256xf32>
    %7 = tpu.matmul %3, %1, %cst {dimension_numbers = #tpu.dot_dimension_numbers<[1], [0], [0], [1], [0, 0, 1, 1], [], []>} : vector<1x64xf32>, vector<64x256xf32>, vector<1x256xf32> -> vector<1x256xf32>
    %8 = arith.addf %6, %7 : vector<1x256xf32>
    %9 = arith.negf %8 : vector<1x256xf32>
    %10 = math.exp %9 : vector<1x256xf32>
    %cst_10 = arith.constant 1.000000e+00 : f32
    %11 = vector.broadcast %cst_10 : f32 to vector<1x256xf32>
    %12 = arith.addf %11, %10 : vector<1x256xf32>
    %13 = arith.divf %11, %12 : vector<1x256xf32>
    %14 = vector.extract_strided_slice %8 {offsets = [0, 128], sizes = [1, 64], strides = [1, 1]} : vector<1x256xf32> to vector<1x64xf32>
    %15 = math.tanh %14 : vector<1x64xf32>
    %16 = vector.extract_strided_slice %13 {offsets = [0, 0], sizes = [1, 64], strides = [1, 1]} : vector<1x256xf32> to vector<1x64xf32>
    %17 = vector.extract_strided_slice %13 {offsets = [0, 64], sizes = [1, 64], strides = [1, 1]} : vector<1x256xf32> to vector<1x64xf32>
    %18 = vector.extract_strided_slice %13 {offsets = [0, 192], sizes = [1, 64], strides = [1, 1]} : vector<1x256xf32> to vector<1x64xf32>
    %19 = arith.mulf %17, %5 : vector<1x64xf32>
    %20 = arith.mulf %16, %15 : vector<1x64xf32>
    %21 = arith.addf %19, %20 : vector<1x64xf32>
    %22 = math.tanh %21 : vector<1x64xf32>
    %23 = arith.mulf %18, %22 : vector<1x64xf32>
    %24 = vector.extract_strided_slice %23 {offsets = [0, 0], sizes = [1, 32], strides = [1, 1]} : vector<1x64xf32> to vector<1x32xf32>
    %c0_11 = arith.constant 0 : index
    %c0_12 = arith.constant 0 : index
    %25 = vector.load %arg11[%c0_11, %c0_12] : memref<8x32xf32, #tpu.memory_space<vmem>>, vector<1x32xf32>
    tpu.vector_store %arg11[%c0_11, %c0_12], %24 {strides = array<i32>} : memref<8x32xf32, #tpu.memory_space<vmem>>, vector<1x32xf32>,
    %26 = vector.extract_strided_slice %23 {offsets = [0, 32], sizes = [1, 32], strides = [1, 1]} : vector<1x64xf32> to vector<1x32xf32>
    %c7 = arith.constant 7 : index
    %c0_13 = arith.constant 0 : index
    %27 = vector.load %arg12[%c7, %c0_13] : memref<8x32xf32, #tpu.memory_space<vmem>>, vector<1x32xf32>
    tpu.vector_store %arg12[%c7, %c0_13], %26 {strides = array<i32>} : memref<8x32xf32, #tpu.memory_space<vmem>>, vector<1x32xf32>,
    %28 = vector.extract_strided_slice %23 {offsets = [0, 0], sizes = [1, 32], strides = [1, 1]} : vector<1x64xf32> to vector<1x32xf32>
    %c7_14 = arith.constant 7 : index
    %c0_15 = arith.constant 0 : index
    %29 = vector.load %arg13[%c7_14, %c0_15] : memref<8x32xf32, #tpu.memory_space<vmem>>, vector<1x32xf32>
    tpu.vector_store %arg13[%c7_14, %c0_15], %28 {strides = array<i32>} : memref<8x32xf32, #tpu.memory_space<vmem>>, vector<1x32xf32>,
    %30 = vector.extract_strided_slice %23 {offsets = [0, 32], sizes = [1, 32], strides = [1, 1]} : vector<1x64xf32> to vector<1x32xf32>
    %c0_16 = arith.constant 0 : index
    %c0_17 = arith.constant 0 : index
    %31 = vector.load %arg14[%c0_16, %c0_17] : memref<8x32xf32, #tpu.memory_space<vmem>>, vector<1x32xf32>
    tpu.vector_store %arg14[%c0_16, %c0_17], %30 {strides = array<i32>} : memref<8x32xf32, #tpu.memory_space<vmem>>, vector<1x32xf32>,
    %c1 = arith.constant 1 : index
    %c0_18 = arith.constant 0 : index
    %32 = vector.load %arg0[%c1, %c0_18] : memref<8x256xf32, #tpu.memory_space<vmem>>, vector<1x256xf32>
    %cst_19 = arith.constant dense<0.000000e+00> : vector<1x256xf32>
    %33 = tpu.matmul %23, %1, %cst_19 {dimension_numbers = #tpu.dot_dimension_numbers<[1], [0], [0], [1], [0, 0, 1, 1], [], []>} : vector<1x64xf32>, vector<64x256xf32>, vector<1x256xf32> -> vector<1x256xf32>
    %34 = arith.addf %32, %33 : vector<1x256xf32>
    %35 = arith.negf %34 : vector<1x256xf32>
    %36 = math.exp %35 : vector<1x256xf32>
    %cst_20 = arith.constant 1.000000e+00 : f32
    %37 = vector.broadcast %cst_20 : f32 to vector<1x256xf32>
    %38 = arith.addf %37, %36 : vector<1x256xf32>
    %39 = arith.divf %37, %38 : vector<1x256xf32>
    %40 = vector.extract_strided_slice %34 {offsets = [0, 128], sizes = [1, 64], strides = [1, 1]} : vector<1x256xf32> to vector<1x64xf32>
    %41 = math.tanh %40 : vector<1x64xf32>
    %42 = vector.extract_strided_slice %39 {offsets = [0, 0], sizes = [1, 64], strides = [1, 1]} : vector<1x256xf32> to vector<1x64xf32>
    %43 = vector.extract_strided_slice %39 {offsets = [0, 64], sizes = [1, 64], strides = [1, 1]} : vector<1x256xf32> to vector<1x64xf32>
    %44 = vector.extract_strided_slice %39 {offsets = [0, 192], sizes = [1, 64], strides = [1, 1]} : vector<1x256xf32> to vector<1x64xf32>
    %45 = arith.mulf %43, %21 : vector<1x64xf32>
    %46 = arith.mulf %42, %41 : vector<1x64xf32>
    %47 = arith.addf %45, %46 : vector<1x64xf32>
    %48 = math.tanh %47 : vector<1x64xf32>
    %49 = arith.mulf %44, %48 : vector<1x64xf32>
    %50 = vector.extract_strided_slice %49 {offsets = [0, 0], sizes = [1, 32], strides = [1, 1]} : vector<1x64xf32> to vector<1x32xf32>
    %c1_21 = arith.constant 1 : index
    %c0_22 = arith.constant 0 : index
    %51 = vector.load %arg11[%c1_21, %c0_22] : memref<8x32xf32, #tpu.memory_space<vmem>>, vector<1x32xf32>
    tpu.vector_store %arg11[%c1_21, %c0_22], %50 {strides = array<i32>} : memref<8x32xf32, #tpu.memory_space<vmem>>, vector<1x32xf32>,
    %52 = vector.extract_strided_slice %49 {offsets = [0, 32], sizes = [1, 32], strides = [1, 1]} : vector<1x64xf32> to vector<1x32xf32>
    %c6 = arith.constant 6 : index
    %c0_23 = arith.constant 0 : index
    %53 = vector.load %arg12[%c6, %c0_23] : memref<8x32xf32, #tpu.memory_space<vmem>>, vector<1x32xf32>
    tpu.vector_store %arg12[%c6, %c0_23], %52 {strides = array<i32>} : memref<8x32xf32, #tpu.memory_space<vmem>>, vector<1x32xf32>,
    %54 = vector.extract_strided_slice %49 {offsets = [0, 0], sizes = [1, 32], strides = [1, 1]} : vector<1x64xf32> to vector<1x32xf32>
    %c6_24 = arith.constant 6 : index
    %c0_25 = arith.constant 0 : index
    %55 = vector.load %arg13[%c6_24, %c0_25] : memref<8x32xf32, #tpu.memory_space<vmem>>, vector<1x32xf32>
    tpu.vector_store %arg13[%c6_24, %c0_25], %54 {strides = array<i32>} : memref<8x32xf32, #tpu.memory_space<vmem>>, vector<1x32xf32>,
    %56 = vector.extract_strided_slice %49 {offsets = [0, 32], sizes = [1, 32], strides = [1, 1]} : vector<1x64xf32> to vector<1x32xf32>
    %c1_26 = arith.constant 1 : index
    %c0_27 = arith.constant 0 : index
    %57 = vector.load %arg14[%c1_26, %c0_27] : memref<8x32xf32, #tpu.memory_space<vmem>>, vector<1x32xf32>
    tpu.vector_store %arg14[%c1_26, %c0_27], %56 {strides = array<i32>} : memref<8x32xf32, #tpu.memory_space<vmem>>, vector<1x32xf32>,
    %c2 = arith.constant 2 : index
    %c0_28 = arith.constant 0 : index
    %58 = vector.load %arg0[%c2, %c0_28] : memref<8x256xf32, #tpu.memory_space<vmem>>, vector<1x256xf32>
    %cst_29 = arith.constant dense<0.000000e+00> : vector<1x256xf32>
    %59 = tpu.matmul %49, %1, %cst_29 {dimension_numbers = #tpu.dot_dimension_numbers<[1], [0], [0], [1], [0, 0, 1, 1], [], []>} : vector<1x64xf32>, vector<64x256xf32>, vector<1x256xf32> -> vector<1x256xf32>
    %60 = arith.addf %58, %59 : vector<1x256xf32>
    %61 = arith.negf %60 : vector<1x256xf32>
    %62 = math.exp %61 : vector<1x256xf32>
    %cst_30 = arith.constant 1.000000e+00 : f32
    %63 = vector.broadcast %cst_30 : f32 to vector<1x256xf32>
    %64 = arith.addf %63, %62 : vector<1x256xf32>
    %65 = arith.divf %63, %64 : vector<1x256xf32>
    %66 = vector.extract_strided_slice %60 {offsets = [0, 128], sizes = [1, 64], strides = [1, 1]} : vector<1x256xf32> to vector<1x64xf32>
    %67 = math.tanh %66 : vector<1x64xf32>
    %68 = vector.extract_strided_slice %65 {offsets = [0, 0], sizes = [1, 64], strides = [1, 1]} : vector<1x256xf32> to vector<1x64xf32>
    %69 = vector.extract_strided_slice %65 {offsets = [0, 64], sizes = [1, 64], strides = [1, 1]} : vector<1x256xf32> to vector<1x64xf32>
    %70 = vector.extract_strided_slice %65 {offsets = [0, 192], sizes = [1, 64], strides = [1, 1]} : vector<1x256xf32> to vector<1x64xf32>
    %71 = arith.mulf %69, %47 : vector<1x64xf32>
    %72 = arith.mulf %68, %67 : vector<1x64xf32>
    %73 = arith.addf %71, %72 : vector<1x64xf32>
    %74 = math.tanh %73 : vector<1x64xf32>
    %75 = arith.mulf %70, %74 : vector<1x64xf32>
    %76 = vector.extract_strided_slice %75 {offsets = [0, 0], sizes = [1, 32], strides = [1, 1]} : vector<1x64xf32> to vector<1x32xf32>
    %c2_31 = arith.constant 2 : index
    %c0_32 = arith.constant 0 : index
    %77 = vector.load %arg11[%c2_31, %c0_32] : memref<8x32xf32, #tpu.memory_space<vmem>>, vector<1x32xf32>
    tpu.vector_store %arg11[%c2_31, %c0_32], %76 {strides = array<i32>} : memref<8x32xf32, #tpu.memory_space<vmem>>, vector<1x32xf32>,
    %78 = vector.extract_strided_slice %75 {offsets = [0, 32], sizes = [1, 32], strides = [1, 1]} : vector<1x64xf32> to vector<1x32xf32>
    %c5 = arith.constant 5 : index
    %c0_33 = arith.constant 0 : index
    %79 = vector.load %arg12[%c5, %c0_33] : memref<8x32xf32, #tpu.memory_space<vmem>>, vector<1x32xf32>
    tpu.vector_store %arg12[%c5, %c0_33], %78 {strides = array<i32>} : memref<8x32xf32, #tpu.memory_space<vmem>>, vector<1x32xf32>,
    %80 = vector.extract_strided_slice %75 {offsets = [0, 0], sizes = [1, 32], strides = [1, 1]} : vector<1x64xf32> to vector<1x32xf32>
    %c5_34 = arith.constant 5 : index
    %c0_35 = arith.constant 0 : index
    %81 = vector.load %arg13[%c5_34, %c0_35] : memref<8x32xf32, #tpu.memory_space<vmem>>, vector<1x32xf32>
    tpu.vector_store %arg13[%c5_34, %c0_35], %80 {strides = array<i32>} : memref<8x32xf32, #tpu.memory_space<vmem>>, vector<1x32xf32>,
    %82 = vector.extract_strided_slice %75 {offsets = [0, 32], sizes = [1, 32], strides = [1, 1]} : vector<1x64xf32> to vector<1x32xf32>
    %c2_36 = arith.constant 2 : index
    %c0_37 = arith.constant 0 : index
    %83 = vector.load %arg14[%c2_36, %c0_37] : memref<8x32xf32, #tpu.memory_space<vmem>>, vector<1x32xf32>
    tpu.vector_store %arg14[%c2_36, %c0_37], %82 {strides = array<i32>} : memref<8x32xf32, #tpu.memory_space<vmem>>, vector<1x32xf32>,
    %c3 = arith.constant 3 : index
    %c0_38 = arith.constant 0 : index
    %84 = vector.load %arg0[%c3, %c0_38] : memref<8x256xf32, #tpu.memory_space<vmem>>, vector<1x256xf32>
    %cst_39 = arith.constant dense<0.000000e+00> : vector<1x256xf32>
    %85 = tpu.matmul %75, %1, %cst_39 {dimension_numbers = #tpu.dot_dimension_numbers<[1], [0], [0], [1], [0, 0, 1, 1], [], []>} : vector<1x64xf32>, vector<64x256xf32>, vector<1x256xf32> -> vector<1x256xf32>
    %86 = arith.addf %84, %85 : vector<1x256xf32>
    %87 = arith.negf %86 : vector<1x256xf32>
    %88 = math.exp %87 : vector<1x256xf32>
    %cst_40 = arith.constant 1.000000e+00 : f32
    %89 = vector.broadcast %cst_40 : f32 to vector<1x256xf32>
    %90 = arith.addf %89, %88 : vector<1x256xf32>
    %91 = arith.divf %89, %90 : vector<1x256xf32>
    %92 = vector.extract_strided_slice %86 {offsets = [0, 128], sizes = [1, 64], strides = [1, 1]} : vector<1x256xf32> to vector<1x64xf32>
    %93 = math.tanh %92 : vector<1x64xf32>
    %94 = vector.extract_strided_slice %91 {offsets = [0, 0], sizes = [1, 64], strides = [1, 1]} : vector<1x256xf32> to vector<1x64xf32>
    %95 = vector.extract_strided_slice %91 {offsets = [0, 64], sizes = [1, 64], strides = [1, 1]} : vector<1x256xf32> to vector<1x64xf32>
    %96 = vector.extract_strided_slice %91 {offsets = [0, 192], sizes = [1, 64], strides = [1, 1]} : vector<1x256xf32> to vector<1x64xf32>
    %97 = arith.mulf %95, %73 : vector<1x64xf32>
    %98 = arith.mulf %94, %93 : vector<1x64xf32>
    %99 = arith.addf %97, %98 : vector<1x64xf32>
    %100 = math.tanh %99 : vector<1x64xf32>
    %101 = arith.mulf %96, %100 : vector<1x64xf32>
    %102 = vector.extract_strided_slice %101 {offsets = [0, 0], sizes = [1, 32], strides = [1, 1]} : vector<1x64xf32> to vector<1x32xf32>
    %c3_41 = arith.constant 3 : index
    %c0_42 = arith.constant 0 : index
    %103 = vector.load %arg11[%c3_41, %c0_42] : memref<8x32xf32, #tpu.memory_space<vmem>>, vector<1x32xf32>
    tpu.vector_store %arg11[%c3_41, %c0_42], %102 {strides = array<i32>} : memref<8x32xf32, #tpu.memory_space<vmem>>, vector<1x32xf32>,
    %104 = vector.extract_strided_slice %101 {offsets = [0, 32], sizes = [1, 32], strides = [1, 1]} : vector<1x64xf32> to vector<1x32xf32>
    %c4 = arith.constant 4 : index
    %c0_43 = arith.constant 0 : index
    %105 = vector.load %arg12[%c4, %c0_43] : memref<8x32xf32, #tpu.memory_space<vmem>>, vector<1x32xf32>
    tpu.vector_store %arg12[%c4, %c0_43], %104 {strides = array<i32>} : memref<8x32xf32, #tpu.memory_space<vmem>>, vector<1x32xf32>,
    %106 = vector.extract_strided_slice %101 {offsets = [0, 0], sizes = [1, 32], strides = [1, 1]} : vector<1x64xf32> to vector<1x32xf32>
    %c4_44 = arith.constant 4 : index
    %c0_45 = arith.constant 0 : index
    %107 = vector.load %arg13[%c4_44, %c0_45] : memref<8x32xf32, #tpu.memory_space<vmem>>, vector<1x32xf32>
    tpu.vector_store %arg13[%c4_44, %c0_45], %106 {strides = array<i32>} : memref<8x32xf32, #tpu.memory_space<vmem>>, vector<1x32xf32>,
    %108 = vector.extract_strided_slice %101 {offsets = [0, 32], sizes = [1, 32], strides = [1, 1]} : vector<1x64xf32> to vector<1x32xf32>
    %c3_46 = arith.constant 3 : index
    %c0_47 = arith.constant 0 : index
    %109 = vector.load %arg14[%c3_46, %c0_47] : memref<8x32xf32, #tpu.memory_space<vmem>>, vector<1x32xf32>
    tpu.vector_store %arg14[%c3_46, %c0_47], %108 {strides = array<i32>} : memref<8x32xf32, #tpu.memory_space<vmem>>, vector<1x32xf32>,
    %c4_48 = arith.constant 4 : index
    %c0_49 = arith.constant 0 : index
    %110 = vector.load %arg0[%c4_48, %c0_49] : memref<8x256xf32, #tpu.memory_space<vmem>>, vector<1x256xf32>
    %cst_50 = arith.constant dense<0.000000e+00> : vector<1x256xf32>
    %111 = tpu.matmul %101, %1, %cst_50 {dimension_numbers = #tpu.dot_dimension_numbers<[1], [0], [0], [1], [0, 0, 1, 1], [], []>} : vector<1x64xf32>, vector<64x256xf32>, vector<1x256xf32> -> vector<1x256xf32>
    %112 = arith.addf %110, %111 : vector<1x256xf32>
    %113 = arith.negf %112 : vector<1x256xf32>
    %114 = math.exp %113 : vector<1x256xf32>
    %cst_51 = arith.constant 1.000000e+00 : f32
    %115 = vector.broadcast %cst_51 : f32 to vector<1x256xf32>
    %116 = arith.addf %115, %114 : vector<1x256xf32>
    %117 = arith.divf %115, %116 : vector<1x256xf32>
    %118 = vector.extract_strided_slice %112 {offsets = [0, 128], sizes = [1, 64], strides = [1, 1]} : vector<1x256xf32> to vector<1x64xf32>
    %119 = math.tanh %118 : vector<1x64xf32>
    %120 = vector.extract_strided_slice %117 {offsets = [0, 0], sizes = [1, 64], strides = [1, 1]} : vector<1x256xf32> to vector<1x64xf32>
    %121 = vector.extract_strided_slice %117 {offsets = [0, 64], sizes = [1, 64], strides = [1, 1]} : vector<1x256xf32> to vector<1x64xf32>
    %122 = vector.extract_strided_slice %117 {offsets = [0, 192], sizes = [1, 64], strides = [1, 1]} : vector<1x256xf32> to vector<1x64xf32>
    %123 = arith.mulf %121, %99 : vector<1x64xf32>
    %124 = arith.mulf %120, %119 : vector<1x64xf32>
    %125 = arith.addf %123, %124 : vector<1x64xf32>
    %126 = math.tanh %125 : vector<1x64xf32>
    %127 = arith.mulf %122, %126 : vector<1x64xf32>
    %128 = vector.extract_strided_slice %127 {offsets = [0, 0], sizes = [1, 32], strides = [1, 1]} : vector<1x64xf32> to vector<1x32xf32>
    %c4_52 = arith.constant 4 : index
    %c0_53 = arith.constant 0 : index
    %129 = vector.load %arg11[%c4_52, %c0_53] : memref<8x32xf32, #tpu.memory_space<vmem>>, vector<1x32xf32>
    tpu.vector_store %arg11[%c4_52, %c0_53], %128 {strides = array<i32>} : memref<8x32xf32, #tpu.memory_space<vmem>>, vector<1x32xf32>,
    %130 = vector.extract_strided_slice %127 {offsets = [0, 32], sizes = [1, 32], strides = [1, 1]} : vector<1x64xf32> to vector<1x32xf32>
    %c3_54 = arith.constant 3 : index
    %c0_55 = arith.constant 0 : index
    %131 = vector.load %arg12[%c3_54, %c0_55] : memref<8x32xf32, #tpu.memory_space<vmem>>, vector<1x32xf32>
    tpu.vector_store %arg12[%c3_54, %c0_55], %130 {strides = array<i32>} : memref<8x32xf32, #tpu.memory_space<vmem>>, vector<1x32xf32>,
    %132 = vector.extract_strided_slice %127 {offsets = [0, 0], sizes = [1, 32], strides = [1, 1]} : vector<1x64xf32> to vector<1x32xf32>
    %c3_56 = arith.constant 3 : index
    %c0_57 = arith.constant 0 : index
    %133 = vector.load %arg13[%c3_56, %c0_57] : memref<8x32xf32, #tpu.memory_space<vmem>>, vector<1x32xf32>
    tpu.vector_store %arg13[%c3_56, %c0_57], %132 {strides = array<i32>} : memref<8x32xf32, #tpu.memory_space<vmem>>, vector<1x32xf32>,
    %134 = vector.extract_strided_slice %127 {offsets = [0, 32], sizes = [1, 32], strides = [1, 1]} : vector<1x64xf32> to vector<1x32xf32>
    %c4_58 = arith.constant 4 : index
    %c0_59 = arith.constant 0 : index
    %135 = vector.load %arg14[%c4_58, %c0_59] : memref<8x32xf32, #tpu.memory_space<vmem>>, vector<1x32xf32>
    tpu.vector_store %arg14[%c4_58, %c0_59], %134 {strides = array<i32>} : memref<8x32xf32, #tpu.memory_space<vmem>>, vector<1x32xf32>,
    %c5_60 = arith.constant 5 : index
    %c0_61 = arith.constant 0 : index
    %136 = vector.load %arg0[%c5_60, %c0_61] : memref<8x256xf32, #tpu.memory_space<vmem>>, vector<1x256xf32>
    %cst_62 = arith.constant dense<0.000000e+00> : vector<1x256xf32>
    %137 = tpu.matmul %127, %1, %cst_62 {dimension_numbers = #tpu.dot_dimension_numbers<[1], [0], [0], [1], [0, 0, 1, 1], [], []>} : vector<1x64xf32>, vector<64x256xf32>, vector<1x256xf32> -> vector<1x256xf32>
    %138 = arith.addf %136, %137 : vector<1x256xf32>
    %139 = arith.negf %138 : vector<1x256xf32>
    %140 = math.exp %139 : vector<1x256xf32>
    %cst_63 = arith.constant 1.000000e+00 : f32
    %141 = vector.broadcast %cst_63 : f32 to vector<1x256xf32>
    %142 = arith.addf %141, %140 : vector<1x256xf32>
    %143 = arith.divf %141, %142 : vector<1x256xf32>
    %144 = vector.extract_strided_slice %138 {offsets = [0, 128], sizes = [1, 64], strides = [1, 1]} : vector<1x256xf32> to vector<1x64xf32>
    %145 = math.tanh %144 : vector<1x64xf32>
    %146 = vector.extract_strided_slice %143 {offsets = [0, 0], sizes = [1, 64], strides = [1, 1]} : vector<1x256xf32> to vector<1x64xf32>
    %147 = vector.extract_strided_slice %143 {offsets = [0, 64], sizes = [1, 64], strides = [1, 1]} : vector<1x256xf32> to vector<1x64xf32>
    %148 = vector.extract_strided_slice %143 {offsets = [0, 192], sizes = [1, 64], strides = [1, 1]} : vector<1x256xf32> to vector<1x64xf32>
    %149 = arith.mulf %147, %125 : vector<1x64xf32>
    %150 = arith.mulf %146, %145 : vector<1x64xf32>
    %151 = arith.addf %149, %150 : vector<1x64xf32>
    %152 = math.tanh %151 : vector<1x64xf32>
    %153 = arith.mulf %148, %152 : vector<1x64xf32>
    %154 = vector.extract_strided_slice %153 {offsets = [0, 0], sizes = [1, 32], strides = [1, 1]} : vector<1x64xf32> to vector<1x32xf32>
    %c5_64 = arith.constant 5 : index
    %c0_65 = arith.constant 0 : index
    %155 = vector.load %arg11[%c5_64, %c0_65] : memref<8x32xf32, #tpu.memory_space<vmem>>, vector<1x32xf32>
    tpu.vector_store %arg11[%c5_64, %c0_65], %154 {strides = array<i32>} : memref<8x32xf32, #tpu.memory_space<vmem>>, vector<1x32xf32>,
    %156 = vector.extract_strided_slice %153 {offsets = [0, 32], sizes = [1, 32], strides = [1, 1]} : vector<1x64xf32> to vector<1x32xf32>
    %c2_66 = arith.constant 2 : index
    %c0_67 = arith.constant 0 : index
    %157 = vector.load %arg12[%c2_66, %c0_67] : memref<8x32xf32, #tpu.memory_space<vmem>>, vector<1x32xf32>
    tpu.vector_store %arg12[%c2_66, %c0_67], %156 {strides = array<i32>} : memref<8x32xf32, #tpu.memory_space<vmem>>, vector<1x32xf32>,
    %158 = vector.extract_strided_slice %153 {offsets = [0, 0], sizes = [1, 32], strides = [1, 1]} : vector<1x64xf32> to vector<1x32xf32>
    %c2_68 = arith.constant 2 : index
    %c0_69 = arith.constant 0 : index
    %159 = vector.load %arg13[%c2_68, %c0_69] : memref<8x32xf32, #tpu.memory_space<vmem>>, vector<1x32xf32>
    tpu.vector_store %arg13[%c2_68, %c0_69], %158 {strides = array<i32>} : memref<8x32xf32, #tpu.memory_space<vmem>>, vector<1x32xf32>,
    %160 = vector.extract_strided_slice %153 {offsets = [0, 32], sizes = [1, 32], strides = [1, 1]} : vector<1x64xf32> to vector<1x32xf32>
    %c5_70 = arith.constant 5 : index
    %c0_71 = arith.constant 0 : index
    %161 = vector.load %arg14[%c5_70, %c0_71] : memref<8x32xf32, #tpu.memory_space<vmem>>, vector<1x32xf32>
    tpu.vector_store %arg14[%c5_70, %c0_71], %160 {strides = array<i32>} : memref<8x32xf32, #tpu.memory_space<vmem>>, vector<1x32xf32>,
    %c6_72 = arith.constant 6 : index
    %c0_73 = arith.constant 0 : index
    %162 = vector.load %arg0[%c6_72, %c0_73] : memref<8x256xf32, #tpu.memory_space<vmem>>, vector<1x256xf32>
    %cst_74 = arith.constant dense<0.000000e+00> : vector<1x256xf32>
    %163 = tpu.matmul %153, %1, %cst_74 {dimension_numbers = #tpu.dot_dimension_numbers<[1], [0], [0], [1], [0, 0, 1, 1], [], []>} : vector<1x64xf32>, vector<64x256xf32>, vector<1x256xf32> -> vector<1x256xf32>
    %164 = arith.addf %162, %163 : vector<1x256xf32>
    %165 = arith.negf %164 : vector<1x256xf32>
    %166 = math.exp %165 : vector<1x256xf32>
    %cst_75 = arith.constant 1.000000e+00 : f32
    %167 = vector.broadcast %cst_75 : f32 to vector<1x256xf32>
    %168 = arith.addf %167, %166 : vector<1x256xf32>
    %169 = arith.divf %167, %168 : vector<1x256xf32>
    %170 = vector.extract_strided_slice %164 {offsets = [0, 128], sizes = [1, 64], strides = [1, 1]} : vector<1x256xf32> to vector<1x64xf32>
    %171 = math.tanh %170 : vector<1x64xf32>
    %172 = vector.extract_strided_slice %169 {offsets = [0, 0], sizes = [1, 64], strides = [1, 1]} : vector<1x256xf32> to vector<1x64xf32>
    %173 = vector.extract_strided_slice %169 {offsets = [0, 64], sizes = [1, 64], strides = [1, 1]} : vector<1x256xf32> to vector<1x64xf32>
    %174 = vector.extract_strided_slice %169 {offsets = [0, 192], sizes = [1, 64], strides = [1, 1]} : vector<1x256xf32> to vector<1x64xf32>
    %175 = arith.mulf %173, %151 : vector<1x64xf32>
    %176 = arith.mulf %172, %171 : vector<1x64xf32>
    %177 = arith.addf %175, %176 : vector<1x64xf32>
    %178 = math.tanh %177 : vector<1x64xf32>
    %179 = arith.mulf %174, %178 : vector<1x64xf32>
    %180 = vector.extract_strided_slice %179 {offsets = [0, 0], sizes = [1, 32], strides = [1, 1]} : vector<1x64xf32> to vector<1x32xf32>
    %c6_76 = arith.constant 6 : index
    %c0_77 = arith.constant 0 : index
    %181 = vector.load %arg11[%c6_76, %c0_77] : memref<8x32xf32, #tpu.memory_space<vmem>>, vector<1x32xf32>
    tpu.vector_store %arg11[%c6_76, %c0_77], %180 {strides = array<i32>} : memref<8x32xf32, #tpu.memory_space<vmem>>, vector<1x32xf32>,
    %182 = vector.extract_strided_slice %179 {offsets = [0, 32], sizes = [1, 32], strides = [1, 1]} : vector<1x64xf32> to vector<1x32xf32>
    %c1_78 = arith.constant 1 : index
    %c0_79 = arith.constant 0 : index
    %183 = vector.load %arg12[%c1_78, %c0_79] : memref<8x32xf32, #tpu.memory_space<vmem>>, vector<1x32xf32>
    tpu.vector_store %arg12[%c1_78, %c0_79], %182 {strides = array<i32>} : memref<8x32xf32, #tpu.memory_space<vmem>>, vector<1x32xf32>,
    %184 = vector.extract_strided_slice %179 {offsets = [0, 0], sizes = [1, 32], strides = [1, 1]} : vector<1x64xf32> to vector<1x32xf32>
    %c1_80 = arith.constant 1 : index
    %c0_81 = arith.constant 0 : index
    %185 = vector.load %arg13[%c1_80, %c0_81] : memref<8x32xf32, #tpu.memory_space<vmem>>, vector<1x32xf32>
    tpu.vector_store %arg13[%c1_80, %c0_81], %184 {strides = array<i32>} : memref<8x32xf32, #tpu.memory_space<vmem>>, vector<1x32xf32>,
    %186 = vector.extract_strided_slice %179 {offsets = [0, 32], sizes = [1, 32], strides = [1, 1]} : vector<1x64xf32> to vector<1x32xf32>
    %c6_82 = arith.constant 6 : index
    %c0_83 = arith.constant 0 : index
    %187 = vector.load %arg14[%c6_82, %c0_83] : memref<8x32xf32, #tpu.memory_space<vmem>>, vector<1x32xf32>
    tpu.vector_store %arg14[%c6_82, %c0_83], %186 {strides = array<i32>} : memref<8x32xf32, #tpu.memory_space<vmem>>, vector<1x32xf32>,
    %c7_84 = arith.constant 7 : index
    %c0_85 = arith.constant 0 : index
    %188 = vector.load %arg0[%c7_84, %c0_85] : memref<8x256xf32, #tpu.memory_space<vmem>>, vector<1x256xf32>
    %cst_86 = arith.constant dense<0.000000e+00> : vector<1x256xf32>
    %189 = tpu.matmul %179, %1, %cst_86 {dimension_numbers = #tpu.dot_dimension_numbers<[1], [0], [0], [1], [0, 0, 1, 1], [], []>} : vector<1x64xf32>, vector<64x256xf32>, vector<1x256xf32> -> vector<1x256xf32>
    %190 = arith.addf %188, %189 : vector<1x256xf32>
    %191 = arith.negf %190 : vector<1x256xf32>
    %192 = math.exp %191 : vector<1x256xf32>
    %cst_87 = arith.constant 1.000000e+00 : f32
    %193 = vector.broadcast %cst_87 : f32 to vector<1x256xf32>
    %194 = arith.addf %193, %192 : vector<1x256xf32>
    %195 = arith.divf %193, %194 : vector<1x256xf32>
    %196 = vector.extract_strided_slice %190 {offsets = [0, 128], sizes = [1, 64], strides = [1, 1]} : vector<1x256xf32> to vector<1x64xf32>
    %197 = math.tanh %196 : vector<1x64xf32>
    %198 = vector.extract_strided_slice %195 {offsets = [0, 0], sizes = [1, 64], strides = [1, 1]} : vector<1x256xf32> to vector<1x64xf32>
    %199 = vector.extract_strided_slice %195 {offsets = [0, 64], sizes = [1, 64], strides = [1, 1]} : vector<1x256xf32> to vector<1x64xf32>
    %200 = vector.extract_strided_slice %195 {offsets = [0, 192], sizes = [1, 64], strides = [1, 1]} : vector<1x256xf32> to vector<1x64xf32>
    %201 = arith.mulf %199, %177 : vector<1x64xf32>
    %202 = arith.mulf %198, %197 : vector<1x64xf32>
    %203 = arith.addf %201, %202 : vector<1x64xf32>
    %204 = math.tanh %203 : vector<1x64xf32>
    %205 = arith.mulf %200, %204 : vector<1x64xf32>
    %206 = vector.extract_strided_slice %205 {offsets = [0, 0], sizes = [1, 32], strides = [1, 1]} : vector<1x64xf32> to vector<1x32xf32>
    %c7_88 = arith.constant 7 : index
    %c0_89 = arith.constant 0 : index
    %207 = vector.load %arg11[%c7_88, %c0_89] : memref<8x32xf32, #tpu.memory_space<vmem>>, vector<1x32xf32>
    tpu.vector_store %arg11[%c7_88, %c0_89], %206 {strides = array<i32>} : memref<8x32xf32, #tpu.memory_space<vmem>>, vector<1x32xf32>,
    %208 = vector.extract_strided_slice %205 {offsets = [0, 32], sizes = [1, 32], strides = [1, 1]} : vector<1x64xf32> to vector<1x32xf32>
    %c0_90 = arith.constant 0 : index
    %c0_91 = arith.constant 0 : index
    %209 = vector.load %arg12[%c0_90, %c0_91] : memref<8x32xf32, #tpu.memory_space<vmem>>, vector<1x32xf32>
    tpu.vector_store %arg12[%c0_90, %c0_91], %208 {strides = array<i32>} : memref<8x32xf32, #tpu.memory_space<vmem>>, vector<1x32xf32>,
    %210 = vector.extract_strided_slice %205 {offsets = [0, 0], sizes = [1, 32], strides = [1, 1]} : vector<1x64xf32> to vector<1x32xf32>
    %c0_92 = arith.constant 0 : index
    %c0_93 = arith.constant 0 : index
    %211 = vector.load %arg13[%c0_92, %c0_93] : memref<8x32xf32, #tpu.memory_space<vmem>>, vector<1x32xf32>
    tpu.vector_store %arg13[%c0_92, %c0_93], %210 {strides = array<i32>} : memref<8x32xf32, #tpu.memory_space<vmem>>, vector<1x32xf32>,
    %212 = vector.extract_strided_slice %205 {offsets = [0, 32], sizes = [1, 32], strides = [1, 1]} : vector<1x64xf32> to vector<1x32xf32>
    %c7_94 = arith.constant 7 : index
    %c0_95 = arith.constant 0 : index
    %213 = vector.load %arg14[%c7_94, %c0_95] : memref<8x32xf32, #tpu.memory_space<vmem>>, vector<1x32xf32>
    tpu.vector_store %arg14[%c7_94, %c0_95], %212 {strides = array<i32>} : memref<8x32xf32, #tpu.memory_space<vmem>>, vector<1x32xf32>,
    %c0_96 = arith.constant 0 : index
    %c0_97 = arith.constant 0 : index
    %c0_98 = arith.constant 0 : index
    %214 = vector.load %arg9[%c0_96, %c0_97, %c0_98] : memref<2x1x64xf32, #tpu.memory_space<vmem>>, vector<1x1x64xf32>
    %215 = vector.shape_cast %214 : vector<1x1x64xf32> to vector<1x64xf32>
    %216 = vector.shape_cast %205 : vector<1x64xf32> to vector<1x1x64xf32>
    tpu.vector_store %arg9[%c0_96, %c0_97, %c0_98], %216 {strides = array<i32>} : memref<2x1x64xf32, #tpu.memory_space<vmem>>, vector<1x1x64xf32>,
    %c0_99 = arith.constant 0 : index
    %c0_100 = arith.constant 0 : index
    %c0_101 = arith.constant 0 : index
    %217 = vector.load %arg10[%c0_99, %c0_100, %c0_101] : memref<2x1x64xf32, #tpu.memory_space<vmem>>, vector<1x1x64xf32>
    %218 = vector.shape_cast %217 : vector<1x1x64xf32> to vector<1x64xf32>
    %219 = vector.shape_cast %203 : vector<1x64xf32> to vector<1x1x64xf32>
    tpu.vector_store %arg10[%c0_99, %c0_100, %c0_101], %219 {strides = array<i32>} : memref<2x1x64xf32, #tpu.memory_space<vmem>>, vector<1x1x64xf32>,
    %c0_102 = arith.constant 0 : index
    %c0_103 = arith.constant 0 : index
    %220 = vector.load %arg11[%c0_102, %c0_103] : memref<8x32xf32, #tpu.memory_space<vmem>>, vector<8x32xf32>
    %c0_104 = arith.constant 0 : index
    %c0_105 = arith.constant 0 : index
    %221 = vector.load %arg12[%c0_104, %c0_105] : memref<8x32xf32, #tpu.memory_space<vmem>>, vector<8x32xf32>
    %c0_106 = arith.constant 0 : index
    %c0_107 = arith.constant 0 : index
    %222 = vector.load %arg13[%c0_106, %c0_107] : memref<8x32xf32, #tpu.memory_space<vmem>>, vector<8x32xf32>
    %c0_108 = arith.constant 0 : index
    %c0_109 = arith.constant 0 : index
    %223 = vector.load %arg14[%c0_108, %c0_109] : memref<8x32xf32, #tpu.memory_space<vmem>>, vector<8x32xf32>
    %224 = tpu.concatenate %220, %221, %222, %223 in 1 : vector<8x32xf32>, vector<8x32xf32>, vector<8x32xf32>, vector<8x32xf32> -> vector<8x128xf32>
    %c0_110 = arith.constant 0 : index
    %c0_111 = arith.constant 0 : index
    %225 = vector.load %arg1[%c0_110, %c0_111] : memref<128x256xf32, #tpu.memory_space<vmem>>, vector<128x256xf32>
    %cst_112 = arith.constant dense<0.000000e+00> : vector<8x256xf32>
    %226 = tpu.matmul %224, %225, %cst_112 {dimension_numbers = #tpu.dot_dimension_numbers<[1], [0], [0], [1], [0, 0, 1, 1], [], []>} : vector<8x128xf32>, vector<128x256xf32>, vector<8x256xf32> -> vector<8x256xf32>
    %c0_113 = arith.constant 0 : index
    %c0_114 = arith.constant 0 : index
    %227 = vector.load %arg2[%c0_113, %c0_114] : memref<1x256xf32, #tpu.memory_space<vmem>>, vector<1x256xf32>
    %228 = vector.broadcast %227 : vector<1x256xf32> to vector<8x256xf32>
    %229 = arith.addf %226, %228 : vector<8x256xf32>
    %c0_115 = arith.constant 0 : index
    %c0_116 = arith.constant 0 : index
    %230 = vector.load %arg15[%c0_115, %c0_116] : memref<8x256xf32, #tpu.memory_space<vmem>>, vector<8x256xf32>
    tpu.vector_store %arg15[%c0_115, %c0_116], %229 {strides = array<i32>} : memref<8x256xf32, #tpu.memory_space<vmem>>, vector<8x256xf32>,
    %c1_117 = arith.constant 1 : index
    %c0_118 = arith.constant 0 : index
    %c0_119 = arith.constant 0 : index
    %231 = vector.load %arg3[%c1_117, %c0_118, %c0_119] : memref<2x64x256xf32, #tpu.memory_space<vmem>>, vector<1x64x256xf32>
    %232 = vector.shape_cast %231 : vector<1x64x256xf32> to vector<64x256xf32>
    %c1_120 = arith.constant 1 : index
    %c0_121 = arith.constant 0 : index
    %c0_122 = arith.constant 0 : index
    %233 = vector.load %arg4[%c1_120, %c0_121, %c0_122] : memref<2x1x64xf32, #tpu.memory_space<vmem>>, vector<1x1x64xf32>
    %234 = vector.shape_cast %233 : vector<1x1x64xf32> to vector<1x64xf32>
    %c1_123 = arith.constant 1 : index
    %c0_124 = arith.constant 0 : index
    %c0_125 = arith.constant 0 : index
    %235 = vector.load %arg5[%c1_123, %c0_124, %c0_125] : memref<2x1x64xf32, #tpu.memory_space<vmem>>, vector<1x1x64xf32>
    %236 = vector.shape_cast %235 : vector<1x1x64xf32> to vector<1x64xf32>
    %c0_126 = arith.constant 0 : index
    %c0_127 = arith.constant 0 : index
    %237 = vector.load %arg15[%c0_126, %c0_127] : memref<8x256xf32, #tpu.memory_space<vmem>>, vector<1x256xf32>
    %cst_128 = arith.constant dense<0.000000e+00> : vector<1x256xf32>
    %238 = tpu.matmul %234, %232, %cst_128 {dimension_numbers = #tpu.dot_dimension_numbers<[1], [0], [0], [1], [0, 0, 1, 1], [], []>} : vector<1x64xf32>, vector<64x256xf32>, vector<1x256xf32> -> vector<1x256xf32>
    %239 = arith.addf %237, %238 : vector<1x256xf32>
    %240 = arith.negf %239 : vector<1x256xf32>
    %241 = math.exp %240 : vector<1x256xf32>
    %cst_129 = arith.constant 1.000000e+00 : f32
    %242 = vector.broadcast %cst_129 : f32 to vector<1x256xf32>
    %243 = arith.addf %242, %241 : vector<1x256xf32>
    %244 = arith.divf %242, %243 : vector<1x256xf32>
    %245 = vector.extract_strided_slice %239 {offsets = [0, 128], sizes = [1, 64], strides = [1, 1]} : vector<1x256xf32> to vector<1x64xf32>
    %246 = math.tanh %245 : vector<1x64xf32>
    %247 = vector.extract_strided_slice %244 {offsets = [0, 0], sizes = [1, 64], strides = [1, 1]} : vector<1x256xf32> to vector<1x64xf32>
    %248 = vector.extract_strided_slice %244 {offsets = [0, 64], sizes = [1, 64], strides = [1, 1]} : vector<1x256xf32> to vector<1x64xf32>
    %249 = vector.extract_strided_slice %244 {offsets = [0, 192], sizes = [1, 64], strides = [1, 1]} : vector<1x256xf32> to vector<1x64xf32>
    %250 = arith.mulf %248, %236 : vector<1x64xf32>
    %251 = arith.mulf %247, %246 : vector<1x64xf32>
    %252 = arith.addf %250, %251 : vector<1x64xf32>
    %253 = math.tanh %252 : vector<1x64xf32>
    %254 = arith.mulf %249, %253 : vector<1x64xf32>
    %255 = vector.extract_strided_slice %254 {offsets = [0, 0], sizes = [1, 32], strides = [1, 1]} : vector<1x64xf32> to vector<1x32xf32>
    %c0_130 = arith.constant 0 : index
    %c0_131 = arith.constant 0 : index
    %256 = vector.load %arg16[%c0_130, %c0_131] : memref<8x32xf32, #tpu.memory_space<vmem>>, vector<1x32xf32>
    tpu.vector_store %arg16[%c0_130, %c0_131], %255 {strides = array<i32>} : memref<8x32xf32, #tpu.memory_space<vmem>>, vector<1x32xf32>,
    %257 = vector.extract_strided_slice %254 {offsets = [0, 32], sizes = [1, 32], strides = [1, 1]} : vector<1x64xf32> to vector<1x32xf32>
    %c7_132 = arith.constant 7 : index
    %c0_133 = arith.constant 0 : index
    %258 = vector.load %arg17[%c7_132, %c0_133] : memref<8x32xf32, #tpu.memory_space<vmem>>, vector<1x32xf32>
    tpu.vector_store %arg17[%c7_132, %c0_133], %257 {strides = array<i32>} : memref<8x32xf32, #tpu.memory_space<vmem>>, vector<1x32xf32>,
    %c1_134 = arith.constant 1 : index
    %c0_135 = arith.constant 0 : index
    %259 = vector.load %arg15[%c1_134, %c0_135] : memref<8x256xf32, #tpu.memory_space<vmem>>, vector<1x256xf32>
    %cst_136 = arith.constant dense<0.000000e+00> : vector<1x256xf32>
    %260 = tpu.matmul %254, %232, %cst_136 {dimension_numbers = #tpu.dot_dimension_numbers<[1], [0], [0], [1], [0, 0, 1, 1], [], []>} : vector<1x64xf32>, vector<64x256xf32>, vector<1x256xf32> -> vector<1x256xf32>
    %261 = arith.addf %259, %260 : vector<1x256xf32>
    %262 = arith.negf %261 : vector<1x256xf32>
    %263 = math.exp %262 : vector<1x256xf32>
    %cst_137 = arith.constant 1.000000e+00 : f32
    %264 = vector.broadcast %cst_137 : f32 to vector<1x256xf32>
    %265 = arith.addf %264, %263 : vector<1x256xf32>
    %266 = arith.divf %264, %265 : vector<1x256xf32>
    %267 = vector.extract_strided_slice %261 {offsets = [0, 128], sizes = [1, 64], strides = [1, 1]} : vector<1x256xf32> to vector<1x64xf32>
    %268 = math.tanh %267 : vector<1x64xf32>
    %269 = vector.extract_strided_slice %266 {offsets = [0, 0], sizes = [1, 64], strides = [1, 1]} : vector<1x256xf32> to vector<1x64xf32>
    %270 = vector.extract_strided_slice %266 {offsets = [0, 64], sizes = [1, 64], strides = [1, 1]} : vector<1x256xf32> to vector<1x64xf32>
    %271 = vector.extract_strided_slice %266 {offsets = [0, 192], sizes = [1, 64], strides = [1, 1]} : vector<1x256xf32> to vector<1x64xf32>
    %272 = arith.mulf %270, %252 : vector<1x64xf32>
    %273 = arith.mulf %269, %268 : vector<1x64xf32>
    %274 = arith.addf %272, %273 : vector<1x64xf32>
    %275 = math.tanh %274 : vector<1x64xf32>
    %276 = arith.mulf %271, %275 : vector<1x64xf32>
    %277 = vector.extract_strided_slice %276 {offsets = [0, 0], sizes = [1, 32], strides = [1, 1]} : vector<1x64xf32> to vector<1x32xf32>
    %c1_138 = arith.constant 1 : index
    %c0_139 = arith.constant 0 : index
    %278 = vector.load %arg16[%c1_138, %c0_139] : memref<8x32xf32, #tpu.memory_space<vmem>>, vector<1x32xf32>
    tpu.vector_store %arg16[%c1_138, %c0_139], %277 {strides = array<i32>} : memref<8x32xf32, #tpu.memory_space<vmem>>, vector<1x32xf32>,
    %279 = vector.extract_strided_slice %276 {offsets = [0, 32], sizes = [1, 32], strides = [1, 1]} : vector<1x64xf32> to vector<1x32xf32>
    %c6_140 = arith.constant 6 : index
    %c0_141 = arith.constant 0 : index
    %280 = vector.load %arg17[%c6_140, %c0_141] : memref<8x32xf32, #tpu.memory_space<vmem>>, vector<1x32xf32>
    tpu.vector_store %arg17[%c6_140, %c0_141], %279 {strides = array<i32>} : memref<8x32xf32, #tpu.memory_space<vmem>>, vector<1x32xf32>,
    %c2_142 = arith.constant 2 : index
    %c0_143 = arith.constant 0 : index
    %281 = vector.load %arg15[%c2_142, %c0_143] : memref<8x256xf32, #tpu.memory_space<vmem>>, vector<1x256xf32>
    %cst_144 = arith.constant dense<0.000000e+00> : vector<1x256xf32>
    %282 = tpu.matmul %276, %232, %cst_144 {dimension_numbers = #tpu.dot_dimension_numbers<[1], [0], [0], [1], [0, 0, 1, 1], [], []>} : vector<1x64xf32>, vector<64x256xf32>, vector<1x256xf32> -> vector<1x256xf32>
    %283 = arith.addf %281, %282 : vector<1x256xf32>
    %284 = arith.negf %283 : vector<1x256xf32>
    %285 = math.exp %284 : vector<1x256xf32>
    %cst_145 = arith.constant 1.000000e+00 : f32
    %286 = vector.broadcast %cst_145 : f32 to vector<1x256xf32>
    %287 = arith.addf %286, %285 : vector<1x256xf32>
    %288 = arith.divf %286, %287 : vector<1x256xf32>
    %289 = vector.extract_strided_slice %283 {offsets = [0, 128], sizes = [1, 64], strides = [1, 1]} : vector<1x256xf32> to vector<1x64xf32>
    %290 = math.tanh %289 : vector<1x64xf32>
    %291 = vector.extract_strided_slice %288 {offsets = [0, 0], sizes = [1, 64], strides = [1, 1]} : vector<1x256xf32> to vector<1x64xf32>
    %292 = vector.extract_strided_slice %288 {offsets = [0, 64], sizes = [1, 64], strides = [1, 1]} : vector<1x256xf32> to vector<1x64xf32>
    %293 = vector.extract_strided_slice %288 {offsets = [0, 192], sizes = [1, 64], strides = [1, 1]} : vector<1x256xf32> to vector<1x64xf32>
    %294 = arith.mulf %292, %274 : vector<1x64xf32>
    %295 = arith.mulf %291, %290 : vector<1x64xf32>
    %296 = arith.addf %294, %295 : vector<1x64xf32>
    %297 = math.tanh %296 : vector<1x64xf32>
    %298 = arith.mulf %293, %297 : vector<1x64xf32>
    %299 = vector.extract_strided_slice %298 {offsets = [0, 0], sizes = [1, 32], strides = [1, 1]} : vector<1x64xf32> to vector<1x32xf32>
    %c2_146 = arith.constant 2 : index
    %c0_147 = arith.constant 0 : index
    %300 = vector.load %arg16[%c2_146, %c0_147] : memref<8x32xf32, #tpu.memory_space<vmem>>, vector<1x32xf32>
    tpu.vector_store %arg16[%c2_146, %c0_147], %299 {strides = array<i32>} : memref<8x32xf32, #tpu.memory_space<vmem>>, vector<1x32xf32>,
    %301 = vector.extract_strided_slice %298 {offsets = [0, 32], sizes = [1, 32], strides = [1, 1]} : vector<1x64xf32> to vector<1x32xf32>
    %c5_148 = arith.constant 5 : index
    %c0_149 = arith.constant 0 : index
    %302 = vector.load %arg17[%c5_148, %c0_149] : memref<8x32xf32, #tpu.memory_space<vmem>>, vector<1x32xf32>
    tpu.vector_store %arg17[%c5_148, %c0_149], %301 {strides = array<i32>} : memref<8x32xf32, #tpu.memory_space<vmem>>, vector<1x32xf32>,
    %c3_150 = arith.constant 3 : index
    %c0_151 = arith.constant 0 : index
    %303 = vector.load %arg15[%c3_150, %c0_151] : memref<8x256xf32, #tpu.memory_space<vmem>>, vector<1x256xf32>
    %cst_152 = arith.constant dense<0.000000e+00> : vector<1x256xf32>
    %304 = tpu.matmul %298, %232, %cst_152 {dimension_numbers = #tpu.dot_dimension_numbers<[1], [0], [0], [1], [0, 0, 1, 1], [], []>} : vector<1x64xf32>, vector<64x256xf32>, vector<1x256xf32> -> vector<1x256xf32>
    %305 = arith.addf %303, %304 : vector<1x256xf32>
    %306 = arith.negf %305 : vector<1x256xf32>
    %307 = math.exp %306 : vector<1x256xf32>
    %cst_153 = arith.constant 1.000000e+00 : f32
    %308 = vector.broadcast %cst_153 : f32 to vector<1x256xf32>
    %309 = arith.addf %308, %307 : vector<1x256xf32>
    %310 = arith.divf %308, %309 : vector<1x256xf32>
    %311 = vector.extract_strided_slice %305 {offsets = [0, 128], sizes = [1, 64], strides = [1, 1]} : vector<1x256xf32> to vector<1x64xf32>
    %312 = math.tanh %311 : vector<1x64xf32>
    %313 = vector.extract_strided_slice %310 {offsets = [0, 0], sizes = [1, 64], strides = [1, 1]} : vector<1x256xf32> to vector<1x64xf32>
    %314 = vector.extract_strided_slice %310 {offsets = [0, 64], sizes = [1, 64], strides = [1, 1]} : vector<1x256xf32> to vector<1x64xf32>
    %315 = vector.extract_strided_slice %310 {offsets = [0, 192], sizes = [1, 64], strides = [1, 1]} : vector<1x256xf32> to vector<1x64xf32>
    %316 = arith.mulf %314, %296 : vector<1x64xf32>
    %317 = arith.mulf %313, %312 : vector<1x64xf32>
    %318 = arith.addf %316, %317 : vector<1x64xf32>
    %319 = math.tanh %318 : vector<1x64xf32>
    %320 = arith.mulf %315, %319 : vector<1x64xf32>
    %321 = vector.extract_strided_slice %320 {offsets = [0, 0], sizes = [1, 32], strides = [1, 1]} : vector<1x64xf32> to vector<1x32xf32>
    %c3_154 = arith.constant 3 : index
    %c0_155 = arith.constant 0 : index
    %322 = vector.load %arg16[%c3_154, %c0_155] : memref<8x32xf32, #tpu.memory_space<vmem>>, vector<1x32xf32>
    tpu.vector_store %arg16[%c3_154, %c0_155], %321 {strides = array<i32>} : memref<8x32xf32, #tpu.memory_space<vmem>>, vector<1x32xf32>,
    %323 = vector.extract_strided_slice %320 {offsets = [0, 32], sizes = [1, 32], strides = [1, 1]} : vector<1x64xf32> to vector<1x32xf32>
    %c4_156 = arith.constant 4 : index
    %c0_157 = arith.constant 0 : index
    %324 = vector.load %arg17[%c4_156, %c0_157] : memref<8x32xf32, #tpu.memory_space<vmem>>, vector<1x32xf32>
    tpu.vector_store %arg17[%c4_156, %c0_157], %323 {strides = array<i32>} : memref<8x32xf32, #tpu.memory_space<vmem>>, vector<1x32xf32>,
    %c4_158 = arith.constant 4 : index
    %c0_159 = arith.constant 0 : index
    %325 = vector.load %arg15[%c4_158, %c0_159] : memref<8x256xf32, #tpu.memory_space<vmem>>, vector<1x256xf32>
    %cst_160 = arith.constant dense<0.000000e+00> : vector<1x256xf32>
    %326 = tpu.matmul %320, %232, %cst_160 {dimension_numbers = #tpu.dot_dimension_numbers<[1], [0], [0], [1], [0, 0, 1, 1], [], []>} : vector<1x64xf32>, vector<64x256xf32>, vector<1x256xf32> -> vector<1x256xf32>
    %327 = arith.addf %325, %326 : vector<1x256xf32>
    %328 = arith.negf %327 : vector<1x256xf32>
    %329 = math.exp %328 : vector<1x256xf32>
    %cst_161 = arith.constant 1.000000e+00 : f32
    %330 = vector.broadcast %cst_161 : f32 to vector<1x256xf32>
    %331 = arith.addf %330, %329 : vector<1x256xf32>
    %332 = arith.divf %330, %331 : vector<1x256xf32>
    %333 = vector.extract_strided_slice %327 {offsets = [0, 128], sizes = [1, 64], strides = [1, 1]} : vector<1x256xf32> to vector<1x64xf32>
    %334 = math.tanh %333 : vector<1x64xf32>
    %335 = vector.extract_strided_slice %332 {offsets = [0, 0], sizes = [1, 64], strides = [1, 1]} : vector<1x256xf32> to vector<1x64xf32>
    %336 = vector.extract_strided_slice %332 {offsets = [0, 64], sizes = [1, 64], strides = [1, 1]} : vector<1x256xf32> to vector<1x64xf32>
    %337 = vector.extract_strided_slice %332 {offsets = [0, 192], sizes = [1, 64], strides = [1, 1]} : vector<1x256xf32> to vector<1x64xf32>
    %338 = arith.mulf %336, %318 : vector<1x64xf32>
    %339 = arith.mulf %335, %334 : vector<1x64xf32>
    %340 = arith.addf %338, %339 : vector<1x64xf32>
    %341 = math.tanh %340 : vector<1x64xf32>
    %342 = arith.mulf %337, %341 : vector<1x64xf32>
    %343 = vector.extract_strided_slice %342 {offsets = [0, 0], sizes = [1, 32], strides = [1, 1]} : vector<1x64xf32> to vector<1x32xf32>
    %c4_162 = arith.constant 4 : index
    %c0_163 = arith.constant 0 : index
    %344 = vector.load %arg16[%c4_162, %c0_163] : memref<8x32xf32, #tpu.memory_space<vmem>>, vector<1x32xf32>
    tpu.vector_store %arg16[%c4_162, %c0_163], %343 {strides = array<i32>} : memref<8x32xf32, #tpu.memory_space<vmem>>, vector<1x32xf32>,
    %345 = vector.extract_strided_slice %342 {offsets = [0, 32], sizes = [1, 32], strides = [1, 1]} : vector<1x64xf32> to vector<1x32xf32>
    %c3_164 = arith.constant 3 : index
    %c0_165 = arith.constant 0 : index
    %346 = vector.load %arg17[%c3_164, %c0_165] : memref<8x32xf32, #tpu.memory_space<vmem>>, vector<1x32xf32>
    tpu.vector_store %arg17[%c3_164, %c0_165], %345 {strides = array<i32>} : memref<8x32xf32, #tpu.memory_space<vmem>>, vector<1x32xf32>,
    %c5_166 = arith.constant 5 : index
    %c0_167 = arith.constant 0 : index
    %347 = vector.load %arg15[%c5_166, %c0_167] : memref<8x256xf32, #tpu.memory_space<vmem>>, vector<1x256xf32>
    %cst_168 = arith.constant dense<0.000000e+00> : vector<1x256xf32>
    %348 = tpu.matmul %342, %232, %cst_168 {dimension_numbers = #tpu.dot_dimension_numbers<[1], [0], [0], [1], [0, 0, 1, 1], [], []>} : vector<1x64xf32>, vector<64x256xf32>, vector<1x256xf32> -> vector<1x256xf32>
    %349 = arith.addf %347, %348 : vector<1x256xf32>
    %350 = arith.negf %349 : vector<1x256xf32>
    %351 = math.exp %350 : vector<1x256xf32>
    %cst_169 = arith.constant 1.000000e+00 : f32
    %352 = vector.broadcast %cst_169 : f32 to vector<1x256xf32>
    %353 = arith.addf %352, %351 : vector<1x256xf32>
    %354 = arith.divf %352, %353 : vector<1x256xf32>
    %355 = vector.extract_strided_slice %349 {offsets = [0, 128], sizes = [1, 64], strides = [1, 1]} : vector<1x256xf32> to vector<1x64xf32>
    %356 = math.tanh %355 : vector<1x64xf32>
    %357 = vector.extract_strided_slice %354 {offsets = [0, 0], sizes = [1, 64], strides = [1, 1]} : vector<1x256xf32> to vector<1x64xf32>
    %358 = vector.extract_strided_slice %354 {offsets = [0, 64], sizes = [1, 64], strides = [1, 1]} : vector<1x256xf32> to vector<1x64xf32>
    %359 = vector.extract_strided_slice %354 {offsets = [0, 192], sizes = [1, 64], strides = [1, 1]} : vector<1x256xf32> to vector<1x64xf32>
    %360 = arith.mulf %358, %340 : vector<1x64xf32>
    %361 = arith.mulf %357, %356 : vector<1x64xf32>
    %362 = arith.addf %360, %361 : vector<1x64xf32>
    %363 = math.tanh %362 : vector<1x64xf32>
    %364 = arith.mulf %359, %363 : vector<1x64xf32>
    %365 = vector.extract_strided_slice %364 {offsets = [0, 0], sizes = [1, 32], strides = [1, 1]} : vector<1x64xf32> to vector<1x32xf32>
    %c5_170 = arith.constant 5 : index
    %c0_171 = arith.constant 0 : index
    %366 = vector.load %arg16[%c5_170, %c0_171] : memref<8x32xf32, #tpu.memory_space<vmem>>, vector<1x32xf32>
    tpu.vector_store %arg16[%c5_170, %c0_171], %365 {strides = array<i32>} : memref<8x32xf32, #tpu.memory_space<vmem>>, vector<1x32xf32>,
    %367 = vector.extract_strided_slice %364 {offsets = [0, 32], sizes = [1, 32], strides = [1, 1]} : vector<1x64xf32> to vector<1x32xf32>
    %c2_172 = arith.constant 2 : index
    %c0_173 = arith.constant 0 : index
    %368 = vector.load %arg17[%c2_172, %c0_173] : memref<8x32xf32, #tpu.memory_space<vmem>>, vector<1x32xf32>
    tpu.vector_store %arg17[%c2_172, %c0_173], %367 {strides = array<i32>} : memref<8x32xf32, #tpu.memory_space<vmem>>, vector<1x32xf32>,
    %c6_174 = arith.constant 6 : index
    %c0_175 = arith.constant 0 : index
    %369 = vector.load %arg15[%c6_174, %c0_175] : memref<8x256xf32, #tpu.memory_space<vmem>>, vector<1x256xf32>
    %cst_176 = arith.constant dense<0.000000e+00> : vector<1x256xf32>
    %370 = tpu.matmul %364, %232, %cst_176 {dimension_numbers = #tpu.dot_dimension_numbers<[1], [0], [0], [1], [0, 0, 1, 1], [], []>} : vector<1x64xf32>, vector<64x256xf32>, vector<1x256xf32> -> vector<1x256xf32>
    %371 = arith.addf %369, %370 : vector<1x256xf32>
    %372 = arith.negf %371 : vector<1x256xf32>
    %373 = math.exp %372 : vector<1x256xf32>
    %cst_177 = arith.constant 1.000000e+00 : f32
    %374 = vector.broadcast %cst_177 : f32 to vector<1x256xf32>
    %375 = arith.addf %374, %373 : vector<1x256xf32>
    %376 = arith.divf %374, %375 : vector<1x256xf32>
    %377 = vector.extract_strided_slice %371 {offsets = [0, 128], sizes = [1, 64], strides = [1, 1]} : vector<1x256xf32> to vector<1x64xf32>
    %378 = math.tanh %377 : vector<1x64xf32>
    %379 = vector.extract_strided_slice %376 {offsets = [0, 0], sizes = [1, 64], strides = [1, 1]} : vector<1x256xf32> to vector<1x64xf32>
    %380 = vector.extract_strided_slice %376 {offsets = [0, 64], sizes = [1, 64], strides = [1, 1]} : vector<1x256xf32> to vector<1x64xf32>
    %381 = vector.extract_strided_slice %376 {offsets = [0, 192], sizes = [1, 64], strides = [1, 1]} : vector<1x256xf32> to vector<1x64xf32>
    %382 = arith.mulf %380, %362 : vector<1x64xf32>
    %383 = arith.mulf %379, %378 : vector<1x64xf32>
    %384 = arith.addf %382, %383 : vector<1x64xf32>
    %385 = math.tanh %384 : vector<1x64xf32>
    %386 = arith.mulf %381, %385 : vector<1x64xf32>
    %387 = vector.extract_strided_slice %386 {offsets = [0, 0], sizes = [1, 32], strides = [1, 1]} : vector<1x64xf32> to vector<1x32xf32>
    %c6_178 = arith.constant 6 : index
    %c0_179 = arith.constant 0 : index
    %388 = vector.load %arg16[%c6_178, %c0_179] : memref<8x32xf32, #tpu.memory_space<vmem>>, vector<1x32xf32>
    tpu.vector_store %arg16[%c6_178, %c0_179], %387 {strides = array<i32>} : memref<8x32xf32, #tpu.memory_space<vmem>>, vector<1x32xf32>,
    %389 = vector.extract_strided_slice %386 {offsets = [0, 32], sizes = [1, 32], strides = [1, 1]} : vector<1x64xf32> to vector<1x32xf32>
    %c1_180 = arith.constant 1 : index
    %c0_181 = arith.constant 0 : index
    %390 = vector.load %arg17[%c1_180, %c0_181] : memref<8x32xf32, #tpu.memory_space<vmem>>, vector<1x32xf32>
    tpu.vector_store %arg17[%c1_180, %c0_181], %389 {strides = array<i32>} : memref<8x32xf32, #tpu.memory_space<vmem>>, vector<1x32xf32>,
    %c7_182 = arith.constant 7 : index
    %c0_183 = arith.constant 0 : index
    %391 = vector.load %arg15[%c7_182, %c0_183] : memref<8x256xf32, #tpu.memory_space<vmem>>, vector<1x256xf32>
    %cst_184 = arith.constant dense<0.000000e+00> : vector<1x256xf32>
    %392 = tpu.matmul %386, %232, %cst_184 {dimension_numbers = #tpu.dot_dimension_numbers<[1], [0], [0], [1], [0, 0, 1, 1], [], []>} : vector<1x64xf32>, vector<64x256xf32>, vector<1x256xf32> -> vector<1x256xf32>
    %393 = arith.addf %391, %392 : vector<1x256xf32>
    %394 = arith.negf %393 : vector<1x256xf32>
    %395 = math.exp %394 : vector<1x256xf32>
    %cst_185 = arith.constant 1.000000e+00 : f32
    %396 = vector.broadcast %cst_185 : f32 to vector<1x256xf32>
    %397 = arith.addf %396, %395 : vector<1x256xf32>
    %398 = arith.divf %396, %397 : vector<1x256xf32>
    %399 = vector.extract_strided_slice %393 {offsets = [0, 128], sizes = [1, 64], strides = [1, 1]} : vector<1x256xf32> to vector<1x64xf32>
    %400 = math.tanh %399 : vector<1x64xf32>
    %401 = vector.extract_strided_slice %398 {offsets = [0, 0], sizes = [1, 64], strides = [1, 1]} : vector<1x256xf32> to vector<1x64xf32>
    %402 = vector.extract_strided_slice %398 {offsets = [0, 64], sizes = [1, 64], strides = [1, 1]} : vector<1x256xf32> to vector<1x64xf32>
    %403 = vector.extract_strided_slice %398 {offsets = [0, 192], sizes = [1, 64], strides = [1, 1]} : vector<1x256xf32> to vector<1x64xf32>
    %404 = arith.mulf %402, %384 : vector<1x64xf32>
    %405 = arith.mulf %401, %400 : vector<1x64xf32>
    %406 = arith.addf %404, %405 : vector<1x64xf32>
    %407 = math.tanh %406 : vector<1x64xf32>
    %408 = arith.mulf %403, %407 : vector<1x64xf32>
    %409 = vector.extract_strided_slice %408 {offsets = [0, 0], sizes = [1, 32], strides = [1, 1]} : vector<1x64xf32> to vector<1x32xf32>
    %c7_186 = arith.constant 7 : index
    %c0_187 = arith.constant 0 : index
    %410 = vector.load %arg16[%c7_186, %c0_187] : memref<8x32xf32, #tpu.memory_space<vmem>>, vector<1x32xf32>
    tpu.vector_store %arg16[%c7_186, %c0_187], %409 {strides = array<i32>} : memref<8x32xf32, #tpu.memory_space<vmem>>, vector<1x32xf32>,
    %411 = vector.extract_strided_slice %408 {offsets = [0, 32], sizes = [1, 32], strides = [1, 1]} : vector<1x64xf32> to vector<1x32xf32>
    %c0_188 = arith.constant 0 : index
    %c0_189 = arith.constant 0 : index
    %412 = vector.load %arg17[%c0_188, %c0_189] : memref<8x32xf32, #tpu.memory_space<vmem>>, vector<1x32xf32>
    tpu.vector_store %arg17[%c0_188, %c0_189], %411 {strides = array<i32>} : memref<8x32xf32, #tpu.memory_space<vmem>>, vector<1x32xf32>,
    %c1_190 = arith.constant 1 : index
    %c0_191 = arith.constant 0 : index
    %c0_192 = arith.constant 0 : index
    %413 = vector.load %arg9[%c1_190, %c0_191, %c0_192] : memref<2x1x64xf32, #tpu.memory_space<vmem>>, vector<1x1x64xf32>
    %414 = vector.shape_cast %413 : vector<1x1x64xf32> to vector<1x64xf32>
    %415 = vector.shape_cast %408 : vector<1x64xf32> to vector<1x1x64xf32>
    tpu.vector_store %arg9[%c1_190, %c0_191, %c0_192], %415 {strides = array<i32>} : memref<2x1x64xf32, #tpu.memory_space<vmem>>, vector<1x1x64xf32>,
    %c1_193 = arith.constant 1 : index
    %c0_194 = arith.constant 0 : index
    %c0_195 = arith.constant 0 : index
    %416 = vector.load %arg10[%c1_193, %c0_194, %c0_195] : memref<2x1x64xf32, #tpu.memory_space<vmem>>, vector<1x1x64xf32>
    %417 = vector.shape_cast %416 : vector<1x1x64xf32> to vector<1x64xf32>
    %418 = vector.shape_cast %406 : vector<1x64xf32> to vector<1x1x64xf32>
    tpu.vector_store %arg10[%c1_193, %c0_194, %c0_195], %418 {strides = array<i32>} : memref<2x1x64xf32, #tpu.memory_space<vmem>>, vector<1x1x64xf32>,
    %c0_196 = arith.constant 0 : index
    %c0_197 = arith.constant 0 : index
    %419 = vector.load %arg6[%c0_196, %c0_197] : memref<1x64xf32, #tpu.memory_space<vmem>>, vector<1x64xf32>
    %c0_198 = arith.constant 0 : index
    %c0_199 = arith.constant 0 : index
    %420 = vector.load %arg16[%c0_198, %c0_199] : memref<8x32xf32, #tpu.memory_space<vmem>>, vector<8x32xf32>
    %421 = vector.extract_strided_slice %419 {offsets = [0, 0], sizes = [1, 32], strides = [1, 1]} : vector<1x64xf32> to vector<1x32xf32>
    %422 = vector.broadcast %421 : vector<1x32xf32> to vector<8x32xf32>
    %423 = arith.mulf %420, %422 : vector<8x32xf32>
    %cst_200 = arith.constant dense<0.000000e+00> : vector<8xf32>
    %424 = vector.multi_reduction <add>, %423, %cst_200 [1] : vector<8x32xf32> to vector<8xf32>
    %425 = vector.shape_cast %424 : vector<8xf32> to vector<8x1xf32>
    %c0_201 = arith.constant 0 : index
    %c0_202 = arith.constant 0 : index
    %426 = vector.load %arg17[%c0_201, %c0_202] : memref<8x32xf32, #tpu.memory_space<vmem>>, vector<8x32xf32>
    %427 = vector.extract_strided_slice %419 {offsets = [0, 32], sizes = [1, 32], strides = [1, 1]} : vector<1x64xf32> to vector<1x32xf32>
    %428 = vector.broadcast %427 : vector<1x32xf32> to vector<8x32xf32>
    %429 = arith.mulf %426, %428 : vector<8x32xf32>
    %cst_203 = arith.constant dense<0.000000e+00> : vector<8xf32>
    %430 = vector.multi_reduction <add>, %429, %cst_203 [1] : vector<8x32xf32> to vector<8xf32>
    %431 = vector.shape_cast %430 : vector<8xf32> to vector<8x1xf32>
    %432 = arith.addf %425, %431 : vector<8x1xf32>
    %c0_204 = arith.constant 0 : index
    %c0_205 = arith.constant 0 : index
    %433 = vector.load %arg7[%c0_204, %c0_205] : memref<1x1xf32, #tpu.memory_space<vmem>>, vector<1x1xf32>
    %434 = vector.broadcast %433 : vector<1x1xf32> to vector<8x1xf32>
    %435 = arith.addf %432, %434 : vector<8x1xf32>
    %c0_206 = arith.constant 0 : index
    %c0_207 = arith.constant 0 : index
    %436 = vector.load %arg8[%c0_206, %c0_207] : memref<8x1xf32, #tpu.memory_space<vmem>>, vector<8x1xf32>
    tpu.vector_store %arg8[%c0_206, %c0_207], %435 {strides = array<i32>} : memref<8x1xf32, #tpu.memory_space<vmem>>, vector<8x1xf32>,
    return
  }
}

</mosaic_0001>

<llo_original>
// kernel: rnn_gru_lstm_forward.1
$region0: #{rnn_gru_lstm_forward.1}
  #allocation0 [shape = 'u32[]', space=smem, size = 0x4, offset = 0x4, fixed_abs, tag = 'smem constant byte address 0x4 - core index']
  #allocation1 [shape = 'u32[72,128]{1,0:T(1,128)}', space=vmem, size = 0x9000, scoped, tag = 'internal scratch']
  #allocation2 [shape = 'f32[8,32]{1,0:T(8,128)}', space=vmem, size = 0x1000, scoped, tag = 'scratch operand']
  #allocation3 [shape = 'f32[8,32]{1,0:T(8,128)}', space=vmem, size = 0x1000, scoped, tag = 'scratch operand']
  #allocation4 [shape = 'f32[8,32]{1,0:T(8,128)}', space=vmem, size = 0x1000, scoped, tag = 'scratch operand']
  #allocation5 [shape = 'f32[8,32]{1,0:T(8,128)}', space=vmem, size = 0x1000, scoped, tag = 'scratch operand']
  #allocation6 [shape = 'f32[8,256]{1,0:T(8,128)}', space=vmem, size = 0x2000, scoped, tag = 'scratch operand']
  #allocation7 [shape = 'f32[8,32]{1,0:T(8,128)}', space=vmem, size = 0x1000, scoped, tag = 'scratch operand']
  #allocation8 [shape = 'f32[8,32]{1,0:T(8,128)}', space=vmem, size = 0x1000, scoped, tag = 'scratch operand']
  #allocation9 [shape = 'f32[1,1]{1,0:T(1,128)S(1)}', space=vmem, size = 0x200, scoped, tag = 'scoped memory for rnn_gru_lstm_forward.1']
  %s0 = inlined_call_operand.vmem [shape: f32[8,256], index: 0, kind: input, shape index: {}]
  %s1 = inlined_call_operand.vmem [shape: f32[128,256], index: 1, kind: input, shape index: {}]
  %s2 = inlined_call_operand.vmem [shape: f32[1,256], index: 2, kind: input, shape index: {}]
  %s3 = inlined_call_operand.vmem [shape: f32[2,64,256], index: 3, kind: input, shape index: {}]
  %s4 = inlined_call_operand.vmem [shape: f32[2,1,64], index: 4, kind: input, shape index: {}]
  %s5 = inlined_call_operand.vmem [shape: f32[2,1,64], index: 5, kind: input, shape index: {}]
  %s6 = inlined_call_operand.vmem [shape: f32[1,64], index: 6, kind: input, shape index: {}]
  %s7 = inlined_call_operand.<no memory space> [shape: f32[1,1], index: 7, kind: input, shape index: {}]
  %s8 = inlined_call_operand.vmem [shape: f32[8,1], index: 8, kind: output, shape index: {0}]
  %s9 = inlined_call_operand.vmem [shape: f32[2,1,64], index: 9, kind: output, shape index: {1}]
  %s10 = inlined_call_operand.vmem [shape: f32[2,1,64], index: 10, kind: output, shape index: {2}]
  %11 = xla_tuple %s8, %s9, %s10
  %s12 = sld [smem:[#allocation0]]
  $region58: #{rnn_gru_lstm_forward.1} parent=0
    _
  %s14 = ssub.s32 1, %s12
  %s15 = scalar_select 0, %s14, %s12
  %v16 = vstv %s7
  %17 = vst [vmem:[#allocation9] sm:$0x1] %v16
  // Predicated region
  $region2: #{rnn_gru_lstm_forward.1} parent=0 // pred_check
    _
  $region3: #{rnn_gru_lstm_forward.1} parent=0 // pred_check_branch
    %19 = sbr.rel (0) target = $region5
  $region4: #{rnn_gru_lstm_forward.1} parent=0 // pred_region
    _
  $region5: #{rnn_gru_lstm_forward.1} parent=0 // pred_fallthru
    _
  // Predicated region
  $region6: #{rnn_gru_lstm_forward.1} parent=0 // pred_check
    _
  $region7: #{rnn_gru_lstm_forward.1} parent=0 // pred_check_branch
    %21 = sbr.rel (0) target = $region9
  $region8: #{rnn_gru_lstm_forward.1} parent=0 // pred_region
    _
  $region9: #{rnn_gru_lstm_forward.1} parent=0 // pred_fallthru
    _
  // Predicated region
  $region10: #{rnn_gru_lstm_forward.1} parent=0 // pred_check
    _
  $region11: #{rnn_gru_lstm_forward.1} parent=0 // pred_check_branch
    %23 = sbr.rel (0) target = $region13
  $region12: #{rnn_gru_lstm_forward.1} parent=0 // pred_region
    _
  $region13: #{rnn_gru_lstm_forward.1} parent=0 // pred_fallthru
    _
  // Predicated region
  $region14: #{rnn_gru_lstm_forward.1} parent=0 // pred_check
    _
  $region15: #{rnn_gru_lstm_forward.1} parent=0 // pred_check_branch
    %25 = sbr.rel (0) target = $region17
  $region16: #{rnn_gru_lstm_forward.1} parent=0 // pred_region
    _
  $region17: #{rnn_gru_lstm_forward.1} parent=0 // pred_fallthru
    _
  // Predicated region
  $region18: #{rnn_gru_lstm_forward.1} parent=0 // pred_check
    _
  $region19: #{rnn_gru_lstm_forward.1} parent=0 // pred_check_branch
    %27 = sbr.rel (0) target = $region21
  $region20: #{rnn_gru_lstm_forward.1} parent=0 // pred_region
    _
  $region21: #{rnn_gru_lstm_forward.1} parent=0 // pred_fallthru
    _
  // Predicated region
  $region22: #{rnn_gru_lstm_forward.1} parent=0 // pred_check
    _
  $region23: #{rnn_gru_lstm_forward.1} parent=0 // pred_check_branch
    %29 = sbr.rel (0) target = $region25
  $region24: #{rnn_gru_lstm_forward.1} parent=0 // pred_region
    _
  $region25: #{rnn_gru_lstm_forward.1} parent=0 // pred_fallthru
    _
  // Predicated region
  $region26: #{rnn_gru_lstm_forward.1} parent=0 // pred_check
    _
  $region27: #{rnn_gru_lstm_forward.1} parent=0 // pred_check_branch
    %31 = sbr.rel (0) target = $region29
  $region28: #{rnn_gru_lstm_forward.1} parent=0 // pred_region
    _
  $region29: #{rnn_gru_lstm_forward.1} parent=0 // pred_fallthru
    _
  // Predicated region
  $region30: #{rnn_gru_lstm_forward.1} parent=0 // pred_check
    _
  $region31: #{rnn_gru_lstm_forward.1} parent=0 // pred_check_branch
    %33 = sbr.rel (0) target = $region33
  $region32: #{rnn_gru_lstm_forward.1} parent=0 // pred_region
    _
  $region33: #{rnn_gru_lstm_forward.1} parent=0 // pred_fallthru
    _
  %v34 = vld [vmem:[%s3] sm:$0xff]
  %v35 = vld [vmem:[%s3 + $0x8] sm:$0xff]
  %v36 = vld [vmem:[%s3 + $0x10] sm:$0xff]
  %v37 = vld [vmem:[%s3 + $0x18] sm:$0xff]
  %v38 = vld [vmem:[%s3 + $0x20] sm:$0xff]
  %v39 = vld [vmem:[%s3 + $0x28] sm:$0xff]
  %v40 = vld [vmem:[%s3 + $0x30] sm:$0xff]
  %v41 = vld [vmem:[%s3 + $0x38] sm:$0xff]
  %v42 = vld [vmem:[%s3 + $0x40] sm:$0xff]
  %v43 = vld [vmem:[%s3 + $0x48] sm:$0xff]
  %v44 = vld [vmem:[%s3 + $0x50] sm:$0xff]
  %v45 = vld [vmem:[%s3 + $0x58] sm:$0xff]
  %v46 = vld [vmem:[%s3 + $0x60] sm:$0xff]
  %v47 = vld [vmem:[%s3 + $0x68] sm:$0xff]
  %v48 = vld [vmem:[%s3 + $0x70] sm:$0xff]
  %v49 = vld [vmem:[%s3 + $0x78] sm:$0xff]
  %v50 = vld [vmem:[%s4] sm:$0x1]
  %v51 = vld [vmem:[%s5] sm:$0x1]
  %v52 = vld [vmem:[%s0] ss:$8 sm:$0x3]
  %vm53 = vcmask 523264
  %v55 = vsel %vm53, %v50, 0
  %57 = vmatpush.msra.mxu0 0.0
  %58 = vmatpush.msra.mxu0 0.0
  %59 = vmatpush.msra.mxu0 0.0
  %60 = vmatpush.msra.mxu0 0.0
  %61 = vmatpush.msra.mxu0 0.0
  %62 = vmatpush.msra.mxu0 0.0
  %63 = vmatpush.msra.mxu0 0.0
  %64 = vmatpush.msra.mxu0 0.0
  %65 = vmatpush.msra.mxu0 %v48
  %66 = vmatpush.msra.mxu0 %v46
  %67 = vmatpush.msra.mxu0 %v44
  %68 = vmatpush.msra.mxu0 %v42
  %69 = vmatpush.msra.mxu0 %v40
  %70 = vmatpush.msra.mxu0 %v38
  %71 = vmatpush.msra.mxu0 %v36
  %72 = vmatpush.msra.mxu0 %v34
  %73 = vmatmul.f32.gmra.mxu0 %v55
  %v74 = vpop.f32.mrf.mxu0
  %v75 = vadd.f32 0.0, %v74
  %76 = vdwg.mxu0
  %77 = vmatpush.msra.mxu0 0.0
  %78 = vmatpush.msra.mxu0 0.0
  %79 = vmatpush.msra.mxu0 0.0
  %80 = vmatpush.msra.mxu0 0.0
  %81 = vmatpush.msra.mxu0 0.0
  %82 = vmatpush.msra.mxu0 0.0
  %83 = vmatpush.msra.mxu0 0.0
  %84 = vmatpush.msra.mxu0 0.0
  %85 = vmatpush.msra.mxu0 %v49
  %86 = vmatpush.msra.mxu0 %v47
  %87 = vmatpush.msra.mxu0 %v45
  %88 = vmatpush.msra.mxu0 %v43
  %89 = vmatpush.msra.mxu0 %v41
  %90 = vmatpush.msra.mxu0 %v39
  %91 = vmatpush.msra.mxu0 %v37
  %92 = vmatpush.msra.mxu0 %v35
  %93 = vmatmul.f32.gmra.mxu0 %v55
  %v94 = vpop.f32.mrf.mxu0
  %v95 = vadd.f32 0.0, %v94
  %96 = vdwg.mxu0
  %v99 = vrot.slane %v95, 7
  %vm100 = vcmask 1040384
  %v101 = vsel %vm100, %v75, %v99
  %v103 = vadd.f32 %v52, %v101
  %v104 = vxor.u32 %v103, 2147483648
  %v105 = vmul.f32 %v104, 1.442695
  %v106 = vpow.pop %v105
  %v107 = vadd.f32 %v106, 1.0
  %v108 = vrcp.pop %v107
  %v109 = vmul.f32 %v107, %v108
  %v110 = vsub.f32 1.0, %v109
  %v111 = vmul.f32 %v108, %v110
  %v112 = vadd.f32 %v108, %v111
  %vm113 = vweird.f32 %v107
  %vm114 = vweird.f32 %v108
  %vm115 = vmor %vm113, %vm114
  %v116 = vsel %vm115, %v108, %v112
  %v117 = vand.u32 2147483647, %v107
  %vm118 = vcmp.eq.f32.partialorder %v117, 8.507059e+37
  %v119 = vand.u32 %v107, 2147483648
  %v120 = vor.u32 1.1754944e-38, %v119
  %v121 = vsel %vm118, %v120, %v116
  %v122 = vmul.f32 1.0, %v121
  %v124 = vrot.slane %v103, 1
  %v126 = vtanh.pop %v124
  %128 = vrot.lane.b32.xlu0 %v51, 64
  %v129 = vpop.permute.xlu0 %128
  %v131 = vmul.f32 %v122, %v129
  %v132 = vmul.f32 %v122, %v126
  %134 = vrot.lane.b32.xlu0 %v132, 64
  %v135 = vpop.permute.xlu0 %134
  %v137 = vadd.f32 %v131, %v135
  %v138 = vtanh.pop %v137
  %140 = vrot.lane.b32.xlu0 %v122, 64
  %v141 = vpop.permute.xlu0 %140
  %v142 = vrot.slane %v141, 1
  %145 = vrot.lane.b32.xlu0 %v138, 64
  %v146 = vpop.permute.xlu0 %145
  %v148 = vmul.f32 %v142, %v146
  %vm149 = vcmask 253952
  %150 = vst.msk [vmem:[#allocation2] sm:$0x1] %vm149, %v148
  %v152 = vperm.slane %v148, 0
  %153 = vrot.lane.b32.xlu0 %v152, 96
  %v154 = vpop.permute.xlu0 %153
  %156 = vst.msk [vmem:[#allocation3 + $0x7] sm:$0x1] %vm149, %v154
  %157 = vst.msk [vmem:[#allocation4 + $0x7] sm:$0x1] %vm149, %v148
  %158 = vst.msk [vmem:[#allocation5] sm:$0x1] %vm149, %v154
  %s159 = scalar_lea.vmem %s0, 1
  %v160 = vld [vmem:[%s159] ss:$8 sm:$0x3]
  %v161 = vsel %vm53, %v148, 0
  %163 = vmatpush.msra.mxu0 0.0
  %164 = vmatpush.msra.mxu0 0.0
  %165 = vmatpush.msra.mxu0 0.0
  %166 = vmatpush.msra.mxu0 0.0
  %167 = vmatpush.msra.mxu0 0.0
  %168 = vmatpush.msra.mxu0 0.0
  %169 = vmatpush.msra.mxu0 0.0
  %170 = vmatpush.msra.mxu0 0.0
  %171 = vmatpush.msra.mxu0 %v48
  %172 = vmatpush.msra.mxu0 %v46
  %173 = vmatpush.msra.mxu0 %v44
  %174 = vmatpush.msra.mxu0 %v42
  %175 = vmatpush.msra.mxu0 %v40
  %176 = vmatpush.msra.mxu0 %v38
  %177 = vmatpush.msra.mxu0 %v36
  %178 = vmatpush.msra.mxu0 %v34
  %179 = vmatmul.f32.gmra.mxu0 %v161
  %v180 = vpop.f32.mrf.mxu0
  %v181 = vadd.f32 0.0, %v180
  %182 = vdwg.mxu0
  %183 = vmatpush.msra.mxu0 0.0
  %184 = vmatpush.msra.mxu0 0.0
  %185 = vmatpush.msra.mxu0 0.0
  %186 = vmatpush.msra.mxu0 0.0
  %187 = vmatpush.msra.mxu0 0.0
  %188 = vmatpush.msra.mxu0 0.0
  %189 = vmatpush.msra.mxu0 0.0
  %190 = vmatpush.msra.mxu0 0.0
  %191 = vmatpush.msra.mxu0 %v49
  %192 = vmatpush.msra.mxu0 %v47
  %193 = vmatpush.msra.mxu0 %v45
  %194 = vmatpush.msra.mxu0 %v43
  %195 = vmatpush.msra.mxu0 %v41
  %196 = vmatpush.msra.mxu0 %v39
  %197 = vmatpush.msra.mxu0 %v37
  %198 = vmatpush.msra.mxu0 %v35
  %199 = vmatmul.f32.gmra.mxu0 %v161
  %v200 = vpop.f32.mrf.mxu0
  %v201 = vadd.f32 0.0, %v200
  %202 = vdwg.mxu0
  %v205 = vrot.slane %v201, 7
  %v206 = vsel %vm100, %v181, %v205
  %v208 = vadd.f32 %v160, %v206
  %v209 = vxor.u32 %v208, 2147483648
  %v210 = vmul.f32 %v209, 1.442695
  %v211 = vpow.pop %v210
  %v212 = vadd.f32 %v211, 1.0
  %v213 = vrcp.pop %v212
  %v214 = vmul.f32 %v212, %v213
  %v215 = vsub.f32 1.0, %v214
  %v216 = vmul.f32 %v213, %v215
  %v217 = vadd.f32 %v213, %v216
  %vm218 = vweird.f32 %v212
  %vm219 = vweird.f32 %v213
  %vm220 = vmor %vm218, %vm219
  %v221 = vsel %vm220, %v213, %v217
  %v222 = vand.u32 2147483647, %v212
  %vm223 = vcmp.eq.f32.partialorder %v222, 8.507059e+37
  %v224 = vand.u32 %v212, 2147483648
  %v225 = vor.u32 1.1754944e-38, %v224
  %v226 = vsel %vm223, %v225, %v221
  %v227 = vmul.f32 1.0, %v226
  %v229 = vrot.slane %v208, 1
  %v231 = vtanh.pop %v229
  %v232 = vmul.f32 %v227, %v137
  %v233 = vmul.f32 %v227, %v231
  %235 = vrot.lane.b32.xlu0 %v233, 64
  %v236 = vpop.permute.xlu0 %235
  %v238 = vadd.f32 %v232, %v236
  %v239 = vtanh.pop %v238
  %241 = vrot.lane.b32.xlu0 %v227, 64
  %v242 = vpop.permute.xlu0 %241
  %v243 = vrot.slane %v242, 1
  %246 = vrot.lane.b32.xlu0 %v239, 64
  %v247 = vpop.permute.xlu0 %246
  %v249 = vmul.f32 %v243, %v247
  %250 = vst.msk [vmem:[#allocation2 + $0x1] sm:$0x1] %vm149, %v249
  %v252 = vperm.slane %v249, 0
  %253 = vrot.lane.b32.xlu0 %v252, 96
  %v254 = vpop.permute.xlu0 %253
  %256 = vst.msk [vmem:[#allocation3 + $0x6] sm:$0x1] %vm149, %v254
  %257 = vst.msk [vmem:[#allocation4 + $0x6] sm:$0x1] %vm149, %v249
  %258 = vst.msk [vmem:[#allocation5 + $0x1] sm:$0x1] %vm149, %v254
  %s259 = scalar_lea.vmem %s0, 2
  %v260 = vld [vmem:[%s259] ss:$8 sm:$0x3]
  %v261 = vsel %vm53, %v249, 0
  %263 = vmatpush.msra.mxu0 0.0
  %264 = vmatpush.msra.mxu0 0.0
  %265 = vmatpush.msra.mxu0 0.0
  %266 = vmatpush.msra.mxu0 0.0
  %267 = vmatpush.msra.mxu0 0.0
  %268 = vmatpush.msra.mxu0 0.0
  %269 = vmatpush.msra.mxu0 0.0
  %270 = vmatpush.msra.mxu0 0.0
  %271 = vmatpush.msra.mxu0 %v48
  %272 = vmatpush.msra.mxu0 %v46
  %273 = vmatpush.msra.mxu0 %v44
  %274 = vmatpush.msra.mxu0 %v42
  %275 = vmatpush.msra.mxu0 %v40
  %276 = vmatpush.msra.mxu0 %v38
  %277 = vmatpush.msra.mxu0 %v36
  %278 = vmatpush.msra.mxu0 %v34
  %279 = vmatmul.f32.gmra.mxu0 %v261
  %v280 = vpop.f32.mrf.mxu0
  %v281 = vadd.f32 0.0, %v280
  %282 = vdwg.mxu0
  %283 = vmatpush.msra.mxu0 0.0
  %284 = vmatpush.msra.mxu0 0.0
  %285 = vmatpush.msra.mxu0 0.0
  %286 = vmatpush.msra.mxu0 0.0
  %287 = vmatpush.msra.mxu0 0.0
  %288 = vmatpush.msra.mxu0 0.0
  %289 = vmatpush.msra.mxu0 0.0
  %290 = vmatpush.msra.mxu0 0.0
  %291 = vmatpush.msra.mxu0 %v49
  %292 = vmatpush.msra.mxu0 %v47
  %293 = vmatpush.msra.mxu0 %v45
  %294 = vmatpush.msra.mxu0 %v43
  %295 = vmatpush.msra.mxu0 %v41
  %296 = vmatpush.msra.mxu0 %v39
  %297 = vmatpush.msra.mxu0 %v37
  %298 = vmatpush.msra.mxu0 %v35
  %299 = vmatmul.f32.gmra.mxu0 %v261
  %v300 = vpop.f32.mrf.mxu0
  %v301 = vadd.f32 0.0, %v300
  %302 = vdwg.mxu0
  %v305 = vrot.slane %v301, 7
  %v306 = vsel %vm100, %v281, %v305
  %v308 = vadd.f32 %v260, %v306
  %v309 = vxor.u32 %v308, 2147483648
  %v310 = vmul.f32 %v309, 1.442695
  %v311 = vpow.pop %v310
  %v312 = vadd.f32 %v311, 1.0
  %v313 = vrcp.pop %v312
  %v314 = vmul.f32 %v312, %v313
  %v315 = vsub.f32 1.0, %v314
  %v316 = vmul.f32 %v313, %v315
  %v317 = vadd.f32 %v313, %v316
  %vm318 = vweird.f32 %v312
  %vm319 = vweird.f32 %v313
  %vm320 = vmor %vm318, %vm319
  %v321 = vsel %vm320, %v313, %v317
  %v322 = vand.u32 2147483647, %v312
  %vm323 = vcmp.eq.f32.partialorder %v322, 8.507059e+37
  %v324 = vand.u32 %v312, 2147483648
  %v325 = vor.u32 1.1754944e-38, %v324
  %v326 = vsel %vm323, %v325, %v321
  %v327 = vmul.f32 1.0, %v326
  %v329 = vrot.slane %v308, 1
  %v331 = vtanh.pop %v329
  %v332 = vmul.f32 %v327, %v238
  %v333 = vmul.f32 %v327, %v331
  %335 = vrot.lane.b32.xlu0 %v333, 64
  %v336 = vpop.permute.xlu0 %335
  %v338 = vadd.f32 %v332, %v336
  %v339 = vtanh.pop %v338
  %341 = vrot.lane.b32.xlu0 %v327, 64
  %v342 = vpop.permute.xlu0 %341
  %v343 = vrot.slane %v342, 1
  %346 = vrot.lane.b32.xlu0 %v339, 64
  %v347 = vpop.permute.xlu0 %346
  %v349 = vmul.f32 %v343, %v347
  %350 = vst.msk [vmem:[#allocation2 + $0x2] sm:$0x1] %vm149, %v349
  %v352 = vperm.slane %v349, 0
  %353 = vrot.lane.b32.xlu0 %v352, 96
  %v354 = vpop.permute.xlu0 %353
  %356 = vst.msk [vmem:[#allocation3 + $0x5] sm:$0x1] %vm149, %v354
  %357 = vst.msk [vmem:[#allocation4 + $0x5] sm:$0x1] %vm149, %v349
  %358 = vst.msk [vmem:[#allocation5 + $0x2] sm:$0x1] %vm149, %v354
  %s359 = scalar_lea.vmem %s0, 3
  %v360 = vld [vmem:[%s359] ss:$8 sm:$0x3]
  %v361 = vsel %vm53, %v349, 0
  %363 = vmatpush.msra.mxu0 0.0
  %364 = vmatpush.msra.mxu0 0.0
  %365 = vmatpush.msra.mxu0 0.0
  %366 = vmatpush.msra.mxu0 0.0
  %367 = vmatpush.msra.mxu0 0.0
  %368 = vmatpush.msra.mxu0 0.0
  %369 = vmatpush.msra.mxu0 0.0
  %370 = vmatpush.msra.mxu0 0.0
  %371 = vmatpush.msra.mxu0 %v48
  %372 = vmatpush.msra.mxu0 %v46
  %373 = vmatpush.msra.mxu0 %v44
  %374 = vmatpush.msra.mxu0 %v42
  %375 = vmatpush.msra.mxu0 %v40
  %376 = vmatpush.msra.mxu0 %v38
  %377 = vmatpush.msra.mxu0 %v36
  %378 = vmatpush.msra.mxu0 %v34
  %379 = vmatmul.f32.gmra.mxu0 %v361
  %v380 = vpop.f32.mrf.mxu0
  %v381 = vadd.f32 0.0, %v380
  %382 = vdwg.mxu0
  %383 = vmatpush.msra.mxu0 0.0
  %384 = vmatpush.msra.mxu0 0.0
  %385 = vmatpush.msra.mxu0 0.0
  %386 = vmatpush.msra.mxu0 0.0
  %387 = vmatpush.msra.mxu0 0.0
  %388 = vmatpush.msra.mxu0 0.0
  %389 = vmatpush.msra.mxu0 0.0
  %390 = vmatpush.msra.mxu0 0.0
  %391 = vmatpush.msra.mxu0 %v49
  %392 = vmatpush.msra.mxu0 %v47
  %393 = vmatpush.msra.mxu0 %v45
  %394 = vmatpush.msra.mxu0 %v43
  %395 = vmatpush.msra.mxu0 %v41
  %396 = vmatpush.msra.mxu0 %v39
  %397 = vmatpush.msra.mxu0 %v37
  %398 = vmatpush.msra.mxu0 %v35
  %399 = vmatmul.f32.gmra.mxu0 %v361
  %v400 = vpop.f32.mrf.mxu0
  %v401 = vadd.f32 0.0, %v400
  %402 = vdwg.mxu0
  %v405 = vrot.slane %v401, 7
  %v406 = vsel %vm100, %v381, %v405
  %v408 = vadd.f32 %v360, %v406
  %v409 = vxor.u32 %v408, 2147483648
  %v410 = vmul.f32 %v409, 1.442695
  %v411 = vpow.pop %v410
  %v412 = vadd.f32 %v411, 1.0
  %v413 = vrcp.pop %v412
  %v414 = vmul.f32 %v412, %v413
  %v415 = vsub.f32 1.0, %v414
  %v416 = vmul.f32 %v413, %v415
  %v417 = vadd.f32 %v413, %v416
  %vm418 = vweird.f32 %v412
  %vm419 = vweird.f32 %v413
  %vm420 = vmor %vm418, %vm419
  %v421 = vsel %vm420, %v413, %v417
  %v422 = vand.u32 2147483647, %v412
  %vm423 = vcmp.eq.f32.partialorder %v422, 8.507059e+37
  %v424 = vand.u32 %v412, 2147483648
  %v425 = vor.u32 1.1754944e-38, %v424
  %v426 = vsel %vm423, %v425, %v421
  %v427 = vmul.f32 1.0, %v426
  %v429 = vrot.slane %v408, 1
  %v431 = vtanh.pop %v429
  %v432 = vmul.f32 %v427, %v338
  %v433 = vmul.f32 %v427, %v431
  %435 = vrot.lane.b32.xlu0 %v433, 64
  %v436 = vpop.permute.xlu0 %435
  %v438 = vadd.f32 %v432, %v436
  %v439 = vtanh.pop %v438
  %441 = vrot.lane.b32.xlu0 %v427, 64
  %v442 = vpop.permute.xlu0 %441
  %v443 = vrot.slane %v442, 1
  %446 = vrot.lane.b32.xlu0 %v439, 64
  %v447 = vpop.permute.xlu0 %446
  %v449 = vmul.f32 %v443, %v447
  %450 = vst.msk [vmem:[#allocation2 + $0x3] sm:$0x1] %vm149, %v449
  %v452 = vperm.slane %v449, 0
  %453 = vrot.lane.b32.xlu0 %v452, 96
  %v454 = vpop.permute.xlu0 %453
  %456 = vst.msk [vmem:[#allocation3 + $0x4] sm:$0x1] %vm149, %v454
  %457 = vst.msk [vmem:[#allocation4 + $0x4] sm:$0x1] %vm149, %v449
  %458 = vst.msk [vmem:[#allocation5 + $0x3] sm:$0x1] %vm149, %v454
  %s459 = scalar_lea.vmem %s0, 4
  %v460 = vld [vmem:[%s459] ss:$8 sm:$0x3]
  %v461 = vsel %vm53, %v449, 0
  %463 = vmatpush.msra.mxu0 0.0
  %464 = vmatpush.msra.mxu0 0.0
  %465 = vmatpush.msra.mxu0 0.0
  %466 = vmatpush.msra.mxu0 0.0
  %467 = vmatpush.msra.mxu0 0.0
  %468 = vmatpush.msra.mxu0 0.0
  %469 = vmatpush.msra.mxu0 0.0
  %470 = vmatpush.msra.mxu0 0.0
  %471 = vmatpush.msra.mxu0 %v48
  %472 = vmatpush.msra.mxu0 %v46
  %473 = vmatpush.msra.mxu0 %v44
  %474 = vmatpush.msra.mxu0 %v42
  %475 = vmatpush.msra.mxu0 %v40
  %476 = vmatpush.msra.mxu0 %v38
  %477 = vmatpush.msra.mxu0 %v36
  %478 = vmatpush.msra.mxu0 %v34
  %479 = vmatmul.f32.gmra.mxu0 %v461
  %v480 = vpop.f32.mrf.mxu0
  %v481 = vadd.f32 0.0, %v480
  %482 = vdwg.mxu0
  %483 = vmatpush.msra.mxu0 0.0
  %484 = vmatpush.msra.mxu0 0.0
  %485 = vmatpush.msra.mxu0 0.0
  %486 = vmatpush.msra.mxu0 0.0
  %487 = vmatpush.msra.mxu0 0.0
  %488 = vmatpush.msra.mxu0 0.0
  %489 = vmatpush.msra.mxu0 0.0
  %490 = vmatpush.msra.mxu0 0.0
  %491 = vmatpush.msra.mxu0 %v49
  %492 = vmatpush.msra.mxu0 %v47
  %493 = vmatpush.msra.mxu0 %v45
  %494 = vmatpush.msra.mxu0 %v43
  %495 = vmatpush.msra.mxu0 %v41
  %496 = vmatpush.msra.mxu0 %v39
  %497 = vmatpush.msra.mxu0 %v37
  %498 = vmatpush.msra.mxu0 %v35
  %499 = vmatmul.f32.gmra.mxu0 %v461
  %v500 = vpop.f32.mrf.mxu0
  %v501 = vadd.f32 0.0, %v500
  %502 = vdwg.mxu0
  %v505 = vrot.slane %v501, 7
  %v506 = vsel %vm100, %v481, %v505
  %v508 = vadd.f32 %v460, %v506
  %v509 = vxor.u32 %v508, 2147483648
  %v510 = vmul.f32 %v509, 1.442695
  %v511 = vpow.pop %v510
  %v512 = vadd.f32 %v511, 1.0
  %v513 = vrcp.pop %v512
  %v514 = vmul.f32 %v512, %v513
  %v515 = vsub.f32 1.0, %v514
  %v516 = vmul.f32 %v513, %v515
  %v517 = vadd.f32 %v513, %v516
  %vm518 = vweird.f32 %v512
  %vm519 = vweird.f32 %v513
  %vm520 = vmor %vm518, %vm519
  %v521 = vsel %vm520, %v513, %v517
  %v522 = vand.u32 2147483647, %v512
  %vm523 = vcmp.eq.f32.partialorder %v522, 8.507059e+37
  %v524 = vand.u32 %v512, 2147483648
  %v525 = vor.u32 1.1754944e-38, %v524
  %v526 = vsel %vm523, %v525, %v521
  %v527 = vmul.f32 1.0, %v526
  %v529 = vrot.slane %v508, 1
  %v531 = vtanh.pop %v529
  %v532 = vmul.f32 %v527, %v438
  %v533 = vmul.f32 %v527, %v531
  %535 = vrot.lane.b32.xlu0 %v533, 64
  %v536 = vpop.permute.xlu0 %535
  %v538 = vadd.f32 %v532, %v536
  %v539 = vtanh.pop %v538
  %541 = vrot.lane.b32.xlu0 %v527, 64
  %v542 = vpop.permute.xlu0 %541
  %v543 = vrot.slane %v542, 1
  %546 = vrot.lane.b32.xlu0 %v539, 64
  %v547 = vpop.permute.xlu0 %546
  %v549 = vmul.f32 %v543, %v547
  %550 = vst.msk [vmem:[#allocation2 + $0x4] sm:$0x1] %vm149, %v549
  %v552 = vperm.slane %v549, 0
  %553 = vrot.lane.b32.xlu0 %v552, 96
  %v554 = vpop.permute.xlu0 %553
  %556 = vst.msk [vmem:[#allocation3 + $0x3] sm:$0x1] %vm149, %v554
  %557 = vst.msk [vmem:[#allocation4 + $0x3] sm:$0x1] %vm149, %v549
  %558 = vst.msk [vmem:[#allocation5 + $0x4] sm:$0x1] %vm149, %v554
  %s559 = scalar_lea.vmem %s0, 5
  %v560 = vld [vmem:[%s559] ss:$8 sm:$0x3]
  %v561 = vsel %vm53, %v549, 0
  %563 = vmatpush.msra.mxu0 0.0
  %564 = vmatpush.msra.mxu0 0.0
  %565 = vmatpush.msra.mxu0 0.0
  %566 = vmatpush.msra.mxu0 0.0
  %567 = vmatpush.msra.mxu0 0.0
  %568 = vmatpush.msra.mxu0 0.0
  %569 = vmatpush.msra.mxu0 0.0
  %570 = vmatpush.msra.mxu0 0.0
  %571 = vmatpush.msra.mxu0 %v48
  %572 = vmatpush.msra.mxu0 %v46
  %573 = vmatpush.msra.mxu0 %v44
  %574 = vmatpush.msra.mxu0 %v42
  %575 = vmatpush.msra.mxu0 %v40
  %576 = vmatpush.msra.mxu0 %v38
  %577 = vmatpush.msra.mxu0 %v36
  %578 = vmatpush.msra.mxu0 %v34
  %579 = vmatmul.f32.gmra.mxu0 %v561
  %v580 = vpop.f32.mrf.mxu0
  %v581 = vadd.f32 0.0, %v580
  %582 = vdwg.mxu0
  %583 = vmatpush.msra.mxu0 0.0
  %584 = vmatpush.msra.mxu0 0.0
  %585 = vmatpush.msra.mxu0 0.0
  %586 = vmatpush.msra.mxu0 0.0
  %587 = vmatpush.msra.mxu0 0.0
  %588 = vmatpush.msra.mxu0 0.0
  %589 = vmatpush.msra.mxu0 0.0
  %590 = vmatpush.msra.mxu0 0.0
  %591 = vmatpush.msra.mxu0 %v49
  %592 = vmatpush.msra.mxu0 %v47
  %593 = vmatpush.msra.mxu0 %v45
  %594 = vmatpush.msra.mxu0 %v43
  %595 = vmatpush.msra.mxu0 %v41
  %596 = vmatpush.msra.mxu0 %v39
  %597 = vmatpush.msra.mxu0 %v37
  %598 = vmatpush.msra.mxu0 %v35
  %599 = vmatmul.f32.gmra.mxu0 %v561
  %v600 = vpop.f32.mrf.mxu0
  %v601 = vadd.f32 0.0, %v600
  %602 = vdwg.mxu0
  %v605 = vrot.slane %v601, 7
  %v606 = vsel %vm100, %v581, %v605
  %v608 = vadd.f32 %v560, %v606
  %v609 = vxor.u32 %v608, 2147483648
  %v610 = vmul.f32 %v609, 1.442695
  %v611 = vpow.pop %v610
  %v612 = vadd.f32 %v611, 1.0
  %v613 = vrcp.pop %v612
  %v614 = vmul.f32 %v612, %v613
  %v615 = vsub.f32 1.0, %v614
  %v616 = vmul.f32 %v613, %v615
  %v617 = vadd.f32 %v613, %v616
  %vm618 = vweird.f32 %v612
  %vm619 = vweird.f32 %v613
  %vm620 = vmor %vm618, %vm619
  %v621 = vsel %vm620, %v613, %v617
  %v622 = vand.u32 2147483647, %v612
  %vm623 = vcmp.eq.f32.partialorder %v622, 8.507059e+37
  %v624 = vand.u32 %v612, 2147483648
  %v625 = vor.u32 1.1754944e-38, %v624
  %v626 = vsel %vm623, %v625, %v621
  %v627 = vmul.f32 1.0, %v626
  %v629 = vrot.slane %v608, 1
  %v631 = vtanh.pop %v629
  %v632 = vmul.f32 %v627, %v538
  %v633 = vmul.f32 %v627, %v631
  %635 = vrot.lane.b32.xlu0 %v633, 64
  %v636 = vpop.permute.xlu0 %635
  %v638 = vadd.f32 %v632, %v636
  %v639 = vtanh.pop %v638
  %641 = vrot.lane.b32.xlu0 %v627, 64
  %v642 = vpop.permute.xlu0 %641
  %v643 = vrot.slane %v642, 1
  %646 = vrot.lane.b32.xlu0 %v639, 64
  %v647 = vpop.permute.xlu0 %646
  %v649 = vmul.f32 %v643, %v647
  %650 = vst.msk [vmem:[#allocation2 + $0x5] sm:$0x1] %vm149, %v649
  %v652 = vperm.slane %v649, 0
  %653 = vrot.lane.b32.xlu0 %v652, 96
  %v654 = vpop.permute.xlu0 %653
  %656 = vst.msk [vmem:[#allocation3 + $0x2] sm:$0x1] %vm149, %v654
  %657 = vst.msk [vmem:[#allocation4 + $0x2] sm:$0x1] %vm149, %v649
  %658 = vst.msk [vmem:[#allocation5 + $0x5] sm:$0x1] %vm149, %v654
  %s659 = scalar_lea.vmem %s0, 6
  %v660 = vld [vmem:[%s659] ss:$8 sm:$0x3]
  %v661 = vsel %vm53, %v649, 0
  %663 = vmatpush.msra.mxu0 0.0
  %664 = vmatpush.msra.mxu0 0.0
  %665 = vmatpush.msra.mxu0 0.0
  %666 = vmatpush.msra.mxu0 0.0
  %667 = vmatpush.msra.mxu0 0.0
  %668 = vmatpush.msra.mxu0 0.0
  %669 = vmatpush.msra.mxu0 0.0
  %670 = vmatpush.msra.mxu0 0.0
  %671 = vmatpush.msra.mxu0 %v48
  %672 = vmatpush.msra.mxu0 %v46
  %673 = vmatpush.msra.mxu0 %v44
  %674 = vmatpush.msra.mxu0 %v42
  %675 = vmatpush.msra.mxu0 %v40
  %676 = vmatpush.msra.mxu0 %v38
  %677 = vmatpush.msra.mxu0 %v36
  %678 = vmatpush.msra.mxu0 %v34
  %679 = vmatmul.f32.gmra.mxu0 %v661
  %v680 = vpop.f32.mrf.mxu0
  %v681 = vadd.f32 0.0, %v680
  %682 = vdwg.mxu0
  %683 = vmatpush.msra.mxu0 0.0
  %684 = vmatpush.msra.mxu0 0.0
  %685 = vmatpush.msra.mxu0 0.0
  %686 = vmatpush.msra.mxu0 0.0
  %687 = vmatpush.msra.mxu0 0.0
  %688 = vmatpush.msra.mxu0 0.0
  %689 = vmatpush.msra.mxu0 0.0
  %690 = vmatpush.msra.mxu0 0.0
  %691 = vmatpush.msra.mxu0 %v49
  %692 = vmatpush.msra.mxu0 %v47
  %693 = vmatpush.msra.mxu0 %v45
  %694 = vmatpush.msra.mxu0 %v43
  %695 = vmatpush.msra.mxu0 %v41
  %696 = vmatpush.msra.mxu0 %v39
  %697 = vmatpush.msra.mxu0 %v37
  %698 = vmatpush.msra.mxu0 %v35
  %699 = vmatmul.f32.gmra.mxu0 %v661
  %v700 = vpop.f32.mrf.mxu0
  %v701 = vadd.f32 0.0, %v700
  %702 = vdwg.mxu0
  %v705 = vrot.slane %v701, 7
  %v706 = vsel %vm100, %v681, %v705
  %v708 = vadd.f32 %v660, %v706
  %v709 = vxor.u32 %v708, 2147483648
  %v710 = vmul.f32 %v709, 1.442695
  %v711 = vpow.pop %v710
  %v712 = vadd.f32 %v711, 1.0
  %v713 = vrcp.pop %v712
  %v714 = vmul.f32 %v712, %v713
  %v715 = vsub.f32 1.0, %v714
  %v716 = vmul.f32 %v713, %v715
  %v717 = vadd.f32 %v713, %v716
  %vm718 = vweird.f32 %v712
  %vm719 = vweird.f32 %v713
  %vm720 = vmor %vm718, %vm719
  %v721 = vsel %vm720, %v713, %v717
  %v722 = vand.u32 2147483647, %v712
  %vm723 = vcmp.eq.f32.partialorder %v722, 8.507059e+37
  %v724 = vand.u32 %v712, 2147483648
  %v725 = vor.u32 1.1754944e-38, %v724
  %v726 = vsel %vm723, %v725, %v721
  %v727 = vmul.f32 1.0, %v726
  %v729 = vrot.slane %v708, 1
  %v731 = vtanh.pop %v729
  %v732 = vmul.f32 %v727, %v638
  %v733 = vmul.f32 %v727, %v731
  %735 = vrot.lane.b32.xlu0 %v733, 64
  %v736 = vpop.permute.xlu0 %735
  %v738 = vadd.f32 %v732, %v736
  %v739 = vtanh.pop %v738
  %741 = vrot.lane.b32.xlu0 %v727, 64
  %v742 = vpop.permute.xlu0 %741
  %v743 = vrot.slane %v742, 1
  %746 = vrot.lane.b32.xlu0 %v739, 64
  %v747 = vpop.permute.xlu0 %746
  %v749 = vmul.f32 %v743, %v747
  %750 = vst.msk [vmem:[#allocation2 + $0x6] sm:$0x1] %vm149, %v749
  %v752 = vperm.slane %v749, 0
  %753 = vrot.lane.b32.xlu0 %v752, 96
  %v754 = vpop.permute.xlu0 %753
  %756 = vst.msk [vmem:[#allocation3 + $0x1] sm:$0x1] %vm149, %v754
  %757 = vst.msk [vmem:[#allocation4 + $0x1] sm:$0x1] %vm149, %v749
  %758 = vst.msk [vmem:[#allocation5 + $0x6] sm:$0x1] %vm149, %v754
  %s759 = scalar_lea.vmem %s0, 7
  %v760 = vld [vmem:[%s759] ss:$8 sm:$0x3]
  %v761 = vsel %vm53, %v749, 0
  %763 = vmatpush.msra.mxu0 0.0
  %764 = vmatpush.msra.mxu0 0.0
  %765 = vmatpush.msra.mxu0 0.0
  %766 = vmatpush.msra.mxu0 0.0
  %767 = vmatpush.msra.mxu0 0.0
  %768 = vmatpush.msra.mxu0 0.0
  %769 = vmatpush.msra.mxu0 0.0
  %770 = vmatpush.msra.mxu0 0.0
  %771 = vmatpush.msra.mxu0 %v48
  %772 = vmatpush.msra.mxu0 %v46
  %773 = vmatpush.msra.mxu0 %v44
  %774 = vmatpush.msra.mxu0 %v42
  %775 = vmatpush.msra.mxu0 %v40
  %776 = vmatpush.msra.mxu0 %v38
  %777 = vmatpush.msra.mxu0 %v36
  %778 = vmatpush.msra.mxu0 %v34
  %779 = vmatmul.f32.gmra.mxu0 %v761
  %v780 = vpop.f32.mrf.mxu0
  %v781 = vadd.f32 0.0, %v780
  %782 = vdwg.mxu0
  %783 = vmatpush.msra.mxu0 0.0
  %784 = vmatpush.msra.mxu0 0.0
  %785 = vmatpush.msra.mxu0 0.0
  %786 = vmatpush.msra.mxu0 0.0
  %787 = vmatpush.msra.mxu0 0.0
  %788 = vmatpush.msra.mxu0 0.0
  %789 = vmatpush.msra.mxu0 0.0
  %790 = vmatpush.msra.mxu0 0.0
  %791 = vmatpush.msra.mxu0 %v49
  %792 = vmatpush.msra.mxu0 %v47
  %793 = vmatpush.msra.mxu0 %v45
  %794 = vmatpush.msra.mxu0 %v43
  %795 = vmatpush.msra.mxu0 %v41
  %796 = vmatpush.msra.mxu0 %v39
  %797 = vmatpush.msra.mxu0 %v37
  %798 = vmatpush.msra.mxu0 %v35
  %799 = vmatmul.f32.gmra.mxu0 %v761
  %v800 = vpop.f32.mrf.mxu0
  %v801 = vadd.f32 0.0, %v800
  %802 = vdwg.mxu0
  %v805 = vrot.slane %v801, 7
  %v806 = vsel %vm100, %v781, %v805
  %v808 = vadd.f32 %v760, %v806
  %v809 = vxor.u32 %v808, 2147483648
  %v810 = vmul.f32 %v809, 1.442695
  %v811 = vpow.pop %v810
  %v812 = vadd.f32 %v811, 1.0
  %v813 = vrcp.pop %v812
  %v814 = vmul.f32 %v812, %v813
  %v815 = vsub.f32 1.0, %v814
  %v816 = vmul.f32 %v813, %v815
  %v817 = vadd.f32 %v813, %v816
  %vm818 = vweird.f32 %v812
  %vm819 = vweird.f32 %v813
  %vm820 = vmor %vm818, %vm819
  %v821 = vsel %vm820, %v813, %v817
  %v822 = vand.u32 2147483647, %v812
  %vm823 = vcmp.eq.f32.partialorder %v822, 8.507059e+37
  %v824 = vand.u32 %v812, 2147483648
  %v825 = vor.u32 1.1754944e-38, %v824
  %v826 = vsel %vm823, %v825, %v821
  %v827 = vmul.f32 1.0, %v826
  %v829 = vrot.slane %v808, 1
  %v831 = vtanh.pop %v829
  %v832 = vmul.f32 %v827, %v738
  %v833 = vmul.f32 %v827, %v831
  %835 = vrot.lane.b32.xlu0 %v833, 64
  %v836 = vpop.permute.xlu0 %835
  %v838 = vadd.f32 %v832, %v836
  %v839 = vtanh.pop %v838
  %841 = vrot.lane.b32.xlu0 %v827, 64
  %v842 = vpop.permute.xlu0 %841
  %v843 = vrot.slane %v842, 1
  %846 = vrot.lane.b32.xlu0 %v839, 64
  %v847 = vpop.permute.xlu0 %846
  %v849 = vmul.f32 %v843, %v847
  %850 = vst.msk [vmem:[#allocation2 + $0x7] sm:$0x1] %vm149, %v849
  %v852 = vperm.slane %v849, 0
  %853 = vrot.lane.b32.xlu0 %v852, 96
  %v854 = vpop.permute.xlu0 %853
  %856 = vst.msk [vmem:[#allocation3] sm:$0x1] %vm149, %v854
  %857 = vst.msk [vmem:[#allocation4] sm:$0x1] %vm149, %v849
  %858 = vst.msk [vmem:[#allocation5 + $0x7] sm:$0x1] %vm149, %v854
  %vm859 = vcmask 516096
  %860 = vst.msk [vmem:[%s9] sm:$0x1] %vm859, %v849
  %v862 = vperm.slane %v838, 0
  %863 = vrot.lane.b32.xlu0 %v862, 64
  %v864 = vpop.permute.xlu0 %863
  %866 = vst.msk [vmem:[%s10] sm:$0x1] %vm859, %v864
  %v867 = vld [vmem:[#allocation2] sm:$0xff]
  %v868 = vld [vmem:[#allocation3] sm:$0xff]
  %v869 = vld [vmem:[#allocation4] sm:$0xff]
  %v870 = vld [vmem:[#allocation5] sm:$0xff]
  %872 = vrot.lane.b32.xlu0 %v868, 32
  %v873 = vpop.permute.xlu0 %872
  %876 = vrot.lane.b32.xlu0 %v869, 64
  %v877 = vpop.permute.xlu0 %876
  %880 = vrot.lane.b32.xlu0 %v870, 96
  %v881 = vpop.permute.xlu0 %880
  %vm883 = vcmask 261120
  %v884 = vsel %vm883, %v867, %v873
  %v885 = vsel %vm53, %v884, %v877
  %vm886 = vcmask 785408
  %v887 = vsel %vm886, %v885, %v881
  %v888 = vld [vmem:[%s1] sm:$0xff]
  %v889 = vld [vmem:[%s1 + $0x8] sm:$0xff]
  %v890 = vld [vmem:[%s1 + $0x10] sm:$0xff]
  %v891 = vld [vmem:[%s1 + $0x18] sm:$0xff]
  %v892 = vld [vmem:[%s1 + $0x20] sm:$0xff]
  %v893 = vld [vmem:[%s1 + $0x28] sm:$0xff]
  %v894 = vld [vmem:[%s1 + $0x30] sm:$0xff]
  %v895 = vld [vmem:[%s1 + $0x38] sm:$0xff]
  %v896 = vld [vmem:[%s1 + $0x40] sm:$0xff]
  %v897 = vld [vmem:[%s1 + $0x48] sm:$0xff]
  %v898 = vld [vmem:[%s1 + $0x50] sm:$0xff]
  %v899 = vld [vmem:[%s1 + $0x58] sm:$0xff]
  %v900 = vld [vmem:[%s1 + $0x60] sm:$0xff]
  %v901 = vld [vmem:[%s1 + $0x68] sm:$0xff]
  %v902 = vld [vmem:[%s1 + $0x70] sm:$0xff]
  %v903 = vld [vmem:[%s1 + $0x78] sm:$0xff]
  %v904 = vld [vmem:[%s1 + $0x80] sm:$0xff]
  %v905 = vld [vmem:[%s1 + $0x88] sm:$0xff]
  %v906 = vld [vmem:[%s1 + $0x90] sm:$0xff]
  %v907 = vld [vmem:[%s1 + $0x98] sm:$0xff]
  %v908 = vld [vmem:[%s1 + $0xa0] sm:$0xff]
  %v909 = vld [vmem:[%s1 + $0xa8] sm:$0xff]
  %v910 = vld [vmem:[%s1 + $0xb0] sm:$0xff]
  %v911 = vld [vmem:[%s1 + $0xb8] sm:$0xff]
  %v912 = vld [vmem:[%s1 + $0xc0] sm:$0xff]
  %v913 = vld [vmem:[%s1 + $0xc8] sm:$0xff]
  %v914 = vld [vmem:[%s1 + $0xd0] sm:$0xff]
  %v915 = vld [vmem:[%s1 + $0xd8] sm:$0xff]
  %v916 = vld [vmem:[%s1 + $0xe0] sm:$0xff]
  %v917 = vld [vmem:[%s1 + $0xe8] sm:$0xff]
  %v918 = vld [vmem:[%s1 + $0xf0] sm:$0xff]
  %v919 = vld [vmem:[%s1 + $0xf8] sm:$0xff]
  %v920 = vld [vmem:[%s2] sm:$0x3]
  %v922 = vperm.slane %v920, 0
  %v923 = vperm.slane %v920, 1
  %926 = vmatpush.msra.mxu0 %v918
  %927 = vmatpush.msra.mxu0 %v916
  %928 = vmatpush.msra.mxu0 %v914
  %929 = vmatpush.msra.mxu0 %v912
  %930 = vmatpush.msra.mxu0 %v910
  %931 = vmatpush.msra.mxu0 %v908
  %932 = vmatpush.msra.mxu0 %v906
  %933 = vmatpush.msra.mxu0 %v904
  %934 = vmatpush.msra.mxu0 %v902
  %935 = vmatpush.msra.mxu0 %v900
  %936 = vmatpush.msra.mxu0 %v898
  %937 = vmatpush.msra.mxu0 %v896
  %938 = vmatpush.msra.mxu0 %v894
  %939 = vmatpush.msra.mxu0 %v892
  %940 = vmatpush.msra.mxu0 %v890
  %941 = vmatpush.msra.mxu0 %v888
  %942 = vmatmul.f32.gmra.mxu0 %v887
  %v943 = vpop.f32.mrf.mxu0
  %v944 = vadd.f32 %v922, %v943
  %945 = vdwg.mxu0
  %946 = vmatpush.msra.mxu0 %v919
  %947 = vmatpush.msra.mxu0 %v917
  %948 = vmatpush.msra.mxu0 %v915
  %949 = vmatpush.msra.mxu0 %v913
  %950 = vmatpush.msra.mxu0 %v911
  %951 = vmatpush.msra.mxu0 %v909
  %952 = vmatpush.msra.mxu0 %v907
  %953 = vmatpush.msra.mxu0 %v905
  %954 = vmatpush.msra.mxu0 %v903
  %955 = vmatpush.msra.mxu0 %v901
  %956 = vmatpush.msra.mxu0 %v899
  %957 = vmatpush.msra.mxu0 %v897
  %958 = vmatpush.msra.mxu0 %v895
  %959 = vmatpush.msra.mxu0 %v893
  %960 = vmatpush.msra.mxu0 %v891
  %961 = vmatpush.msra.mxu0 %v889
  %962 = vmatmul.f32.gmra.mxu0 %v887
  %v963 = vpop.f32.mrf.mxu0
  %v964 = vadd.f32 %v923, %v963
  %965 = vdwg.mxu0
  %966 = vst [vmem:[#allocation6] sm:$0xff] %v944
  %967 = vst [vmem:[#allocation6 + $0x8] sm:$0xff] %v964
  %s968 = scalar_lea.vmem %s3, 128
  %v969 = vld [vmem:[%s968] sm:$0xff]
  %v970 = vld [vmem:[%s968 + $0x8] sm:$0xff]
  %v971 = vld [vmem:[%s968 + $0x10] sm:$0xff]
  %v972 = vld [vmem:[%s968 + $0x18] sm:$0xff]
  %v973 = vld [vmem:[%s968 + $0x20] sm:$0xff]
  %v974 = vld [vmem:[%s968 + $0x28] sm:$0xff]
  %v975 = vld [vmem:[%s968 + $0x30] sm:$0xff]
  %v976 = vld [vmem:[%s968 + $0x38] sm:$0xff]
  %v977 = vld [vmem:[%s968 + $0x40] sm:$0xff]
  %v978 = vld [vmem:[%s968 + $0x48] sm:$0xff]
  %v979 = vld [vmem:[%s968 + $0x50] sm:$0xff]
  %v980 = vld [vmem:[%s968 + $0x58] sm:$0xff]
  %v981 = vld [vmem:[%s968 + $0x60] sm:$0xff]
  %v982 = vld [vmem:[%s968 + $0x68] sm:$0xff]
  %v983 = vld [vmem:[%s968 + $0x70] sm:$0xff]
  %v984 = vld [vmem:[%s968 + $0x78] sm:$0xff]
  %s985 = scalar_lea.vmem %s4, 1
  %v986 = vld [vmem:[%s985] sm:$0x1]
  %s987 = scalar_lea.vmem %s5, 1
  %v988 = vld [vmem:[%s987] sm:$0x1]
  %v989 = vld [vmem:[#allocation6] ss:$8 sm:$0x3]
  %v991 = vsel %vm53, %v986, 0
  %993 = vmatpush.msra.mxu0 0.0
  %994 = vmatpush.msra.mxu0 0.0
  %995 = vmatpush.msra.mxu0 0.0
  %996 = vmatpush.msra.mxu0 0.0
  %997 = vmatpush.msra.mxu0 0.0
  %998 = vmatpush.msra.mxu0 0.0
  %999 = vmatpush.msra.mxu0 0.0
  %1000 = vmatpush.msra.mxu0 0.0
  %1001 = vmatpush.msra.mxu0 %v983
  %1002 = vmatpush.msra.mxu0 %v981
  %1003 = vmatpush.msra.mxu0 %v979
  %1004 = vmatpush.msra.mxu0 %v977
  %1005 = vmatpush.msra.mxu0 %v975
  %1006 = vmatpush.msra.mxu0 %v973
  %1007 = vmatpush.msra.mxu0 %v971
  %1008 = vmatpush.msra.mxu0 %v969
  %1009 = vmatmul.f32.gmra.mxu0 %v991
  %v1010 = vpop.f32.mrf.mxu0
  %v1011 = vadd.f32 0.0, %v1010
  %1012 = vdwg.mxu0
  %1013 = vmatpush.msra.mxu0 0.0
  %1014 = vmatpush.msra.mxu0 0.0
  %1015 = vmatpush.msra.mxu0 0.0
  %1016 = vmatpush.msra.mxu0 0.0
  %1017 = vmatpush.msra.mxu0 0.0
  %1018 = vmatpush.msra.mxu0 0.0
  %1019 = vmatpush.msra.mxu0 0.0
  %1020 = vmatpush.msra.mxu0 0.0
  %1021 = vmatpush.msra.mxu0 %v984
  %1022 = vmatpush.msra.mxu0 %v982
  %1023 = vmatpush.msra.mxu0 %v980
  %1024 = vmatpush.msra.mxu0 %v978
  %1025 = vmatpush.msra.mxu0 %v976
  %1026 = vmatpush.msra.mxu0 %v974
  %1027 = vmatpush.msra.mxu0 %v972
  %1028 = vmatpush.msra.mxu0 %v970
  %1029 = vmatmul.f32.gmra.mxu0 %v991
  %v1030 = vpop.f32.mrf.mxu0
  %v1031 = vadd.f32 0.0, %v1030
  %1032 = vdwg.mxu0
  %v1035 = vrot.slane %v1031, 7
  %v1036 = vsel %vm100, %v1011, %v1035
  %v1038 = vadd.f32 %v989, %v1036
  %v1039 = vxor.u32 %v1038, 2147483648
  %v1040 = vmul.f32 %v1039, 1.442695
  %v1041 = vpow.pop %v1040
  %v1042 = vadd.f32 %v1041, 1.0
  %v1043 = vrcp.pop %v1042
  %v1044 = vmul.f32 %v1042, %v1043
  %v1045 = vsub.f32 1.0, %v1044
  %v1046 = vmul.f32 %v1043, %v1045
  %v1047 = vadd.f32 %v1043, %v1046
  %vm1048 = vweird.f32 %v1042
  %vm1049 = vweird.f32 %v1043
  %vm1050 = vmor %vm1048, %vm1049
  %v1051 = vsel %vm1050, %v1043, %v1047
  %v1052 = vand.u32 2147483647, %v1042
  %vm1053 = vcmp.eq.f32.partialorder %v1052, 8.507059e+37
  %v1054 = vand.u32 %v1042, 2147483648
  %v1055 = vor.u32 1.1754944e-38, %v1054
  %v1056 = vsel %vm1053, %v1055, %v1051
  %v1057 = vmul.f32 1.0, %v1056
  %v1059 = vrot.slane %v1038, 1
  %v1061 = vtanh.pop %v1059
  %1063 = vrot.lane.b32.xlu0 %v988, 64
  %v1064 = vpop.permute.xlu0 %1063
  %v1066 = vmul.f32 %v1057, %v1064
  %v1067 = vmul.f32 %v1057, %v1061
  %1069 = vrot.lane.b32.xlu0 %v1067, 64
  %v1070 = vpop.permute.xlu0 %1069
  %v1072 = vadd.f32 %v1066, %v1070
  %v1073 = vtanh.pop %v1072
  %1075 = vrot.lane.b32.xlu0 %v1057, 64
  %v1076 = vpop.permute.xlu0 %1075
  %v1077 = vrot.slane %v1076, 1
  %1080 = vrot.lane.b32.xlu0 %v1073, 64
  %v1081 = vpop.permute.xlu0 %1080
  %v1083 = vmul.f32 %v1077, %v1081
  %1084 = vst.msk [vmem:[#allocation7] sm:$0x1] %vm149, %v1083
  %v1086 = vperm.slane %v1083, 0
  %1087 = vrot.lane.b32.xlu0 %v1086, 96
  %v1088 = vpop.permute.xlu0 %1087
  %1090 = vst.msk [vmem:[#allocation8 + $0x7] sm:$0x1] %vm149, %v1088
  %s1091 = scalar_lea.vmem [#allocation6], 1
  %v1092 = vld [vmem:[%s1091] ss:$8 sm:$0x3]
  %v1093 = vsel %vm53, %v1083, 0
  %1095 = vmatpush.msra.mxu0 0.0
  %1096 = vmatpush.msra.mxu0 0.0
  %1097 = vmatpush.msra.mxu0 0.0
  %1098 = vmatpush.msra.mxu0 0.0
  %1099 = vmatpush.msra.mxu0 0.0
  %1100 = vmatpush.msra.mxu0 0.0
  %1101 = vmatpush.msra.mxu0 0.0
  %1102 = vmatpush.msra.mxu0 0.0
  %1103 = vmatpush.msra.mxu0 %v983
  %1104 = vmatpush.msra.mxu0 %v981
  %1105 = vmatpush.msra.mxu0 %v979
  %1106 = vmatpush.msra.mxu0 %v977
  %1107 = vmatpush.msra.mxu0 %v975
  %1108 = vmatpush.msra.mxu0 %v973
  %1109 = vmatpush.msra.mxu0 %v971
  %1110 = vmatpush.msra.mxu0 %v969
  %1111 = vmatmul.f32.gmra.mxu0 %v1093
  %v1112 = vpop.f32.mrf.mxu0
  %v1113 = vadd.f32 0.0, %v1112
  %1114 = vdwg.mxu0
  %1115 = vmatpush.msra.mxu0 0.0
  %1116 = vmatpush.msra.mxu0 0.0
  %1117 = vmatpush.msra.mxu0 0.0
  %1118 = vmatpush.msra.mxu0 0.0
  %1119 = vmatpush.msra.mxu0 0.0
  %1120 = vmatpush.msra.mxu0 0.0
  %1121 = vmatpush.msra.mxu0 0.0
  %1122 = vmatpush.msra.mxu0 0.0
  %1123 = vmatpush.msra.mxu0 %v984
  %1124 = vmatpush.msra.mxu0 %v982
  %1125 = vmatpush.msra.mxu0 %v980
  %1126 = vmatpush.msra.mxu0 %v978
  %1127 = vmatpush.msra.mxu0 %v976
  %1128 = vmatpush.msra.mxu0 %v974
  %1129 = vmatpush.msra.mxu0 %v972
  %1130 = vmatpush.msra.mxu0 %v970
  %1131 = vmatmul.f32.gmra.mxu0 %v1093
  %v1132 = vpop.f32.mrf.mxu0
  %v1133 = vadd.f32 0.0, %v1132
  %1134 = vdwg.mxu0
  %v1137 = vrot.slane %v1133, 7
  %v1138 = vsel %vm100, %v1113, %v1137
  %v1140 = vadd.f32 %v1092, %v1138
  %v1141 = vxor.u32 %v1140, 2147483648
  %v1142 = vmul.f32 %v1141, 1.442695
  %v1143 = vpow.pop %v1142
  %v1144 = vadd.f32 %v1143, 1.0
  %v1145 = vrcp.pop %v1144
  %v1146 = vmul.f32 %v1144, %v1145
  %v1147 = vsub.f32 1.0, %v1146
  %v1148 = vmul.f32 %v1145, %v1147
  %v1149 = vadd.f32 %v1145, %v1148
  %vm1150 = vweird.f32 %v1144
  %vm1151 = vweird.f32 %v1145
  %vm1152 = vmor %vm1150, %vm1151
  %v1153 = vsel %vm1152, %v1145, %v1149
  %v1154 = vand.u32 2147483647, %v1144
  %vm1155 = vcmp.eq.f32.partialorder %v1154, 8.507059e+37
  %v1156 = vand.u32 %v1144, 2147483648
  %v1157 = vor.u32 1.1754944e-38, %v1156
  %v1158 = vsel %vm1155, %v1157, %v1153
  %v1159 = vmul.f32 1.0, %v1158
  %v1161 = vrot.slane %v1140, 1
  %v1163 = vtanh.pop %v1161
  %v1164 = vmul.f32 %v1159, %v1072
  %v1165 = vmul.f32 %v1159, %v1163
  %1167 = vrot.lane.b32.xlu0 %v1165, 64
  %v1168 = vpop.permute.xlu0 %1167
  %v1170 = vadd.f32 %v1164, %v1168
  %v1171 = vtanh.pop %v1170
  %1173 = vrot.lane.b32.xlu0 %v1159, 64
  %v1174 = vpop.permute.xlu0 %1173
  %v1175 = vrot.slane %v1174, 1
  %1178 = vrot.lane.b32.xlu0 %v1171, 64
  %v1179 = vpop.permute.xlu0 %1178
  %v1181 = vmul.f32 %v1175, %v1179
  %1182 = vst.msk [vmem:[#allocation7 + $0x1] sm:$0x1] %vm149, %v1181
  %v1184 = vperm.slane %v1181, 0
  %1185 = vrot.lane.b32.xlu0 %v1184, 96
  %v1186 = vpop.permute.xlu0 %1185
  %1188 = vst.msk [vmem:[#allocation8 + $0x6] sm:$0x1] %vm149, %v1186
  %s1189 = scalar_lea.vmem [#allocation6], 2
  %v1190 = vld [vmem:[%s1189] ss:$8 sm:$0x3]
  %v1191 = vsel %vm53, %v1181, 0
  %1193 = vmatpush.msra.mxu0 0.0
  %1194 = vmatpush.msra.mxu0 0.0
  %1195 = vmatpush.msra.mxu0 0.0
  %1196 = vmatpush.msra.mxu0 0.0
  %1197 = vmatpush.msra.mxu0 0.0
  %1198 = vmatpush.msra.mxu0 0.0
  %1199 = vmatpush.msra.mxu0 0.0
  %1200 = vmatpush.msra.mxu0 0.0
  %1201 = vmatpush.msra.mxu0 %v983
  %1202 = vmatpush.msra.mxu0 %v981
  %1203 = vmatpush.msra.mxu0 %v979
  %1204 = vmatpush.msra.mxu0 %v977
  %1205 = vmatpush.msra.mxu0 %v975
  %1206 = vmatpush.msra.mxu0 %v973
  %1207 = vmatpush.msra.mxu0 %v971
  %1208 = vmatpush.msra.mxu0 %v969
  %1209 = vmatmul.f32.gmra.mxu0 %v1191
  %v1210 = vpop.f32.mrf.mxu0
  %v1211 = vadd.f32 0.0, %v1210
  %1212 = vdwg.mxu0
  %1213 = vmatpush.msra.mxu0 0.0
  %1214 = vmatpush.msra.mxu0 0.0
  %1215 = vmatpush.msra.mxu0 0.0
  %1216 = vmatpush.msra.mxu0 0.0
  %1217 = vmatpush.msra.mxu0 0.0
  %1218 = vmatpush.msra.mxu0 0.0
  %1219 = vmatpush.msra.mxu0 0.0
  %1220 = vmatpush.msra.mxu0 0.0
  %1221 = vmatpush.msra.mxu0 %v984
  %1222 = vmatpush.msra.mxu0 %v982
  %1223 = vmatpush.msra.mxu0 %v980
  %1224 = vmatpush.msra.mxu0 %v978
  %1225 = vmatpush.msra.mxu0 %v976
  %1226 = vmatpush.msra.mxu0 %v974
  %1227 = vmatpush.msra.mxu0 %v972
  %1228 = vmatpush.msra.mxu0 %v970
  %1229 = vmatmul.f32.gmra.mxu0 %v1191
  %v1230 = vpop.f32.mrf.mxu0
  %v1231 = vadd.f32 0.0, %v1230
  %1232 = vdwg.mxu0
  %v1235 = vrot.slane %v1231, 7
  %v1236 = vsel %vm100, %v1211, %v1235
  %v1238 = vadd.f32 %v1190, %v1236
  %v1239 = vxor.u32 %v1238, 2147483648
  %v1240 = vmul.f32 %v1239, 1.442695
  %v1241 = vpow.pop %v1240
  %v1242 = vadd.f32 %v1241, 1.0
  %v1243 = vrcp.pop %v1242
  %v1244 = vmul.f32 %v1242, %v1243
  %v1245 = vsub.f32 1.0, %v1244
  %v1246 = vmul.f32 %v1243, %v1245
  %v1247 = vadd.f32 %v1243, %v1246
  %vm1248 = vweird.f32 %v1242
  %vm1249 = vweird.f32 %v1243
  %vm1250 = vmor %vm1248, %vm1249
  %v1251 = vsel %vm1250, %v1243, %v1247
  %v1252 = vand.u32 2147483647, %v1242
  %vm1253 = vcmp.eq.f32.partialorder %v1252, 8.507059e+37
  %v1254 = vand.u32 %v1242, 2147483648
  %v1255 = vor.u32 1.1754944e-38, %v1254
  %v1256 = vsel %vm1253, %v1255, %v1251
  %v1257 = vmul.f32 1.0, %v1256
  %v1259 = vrot.slane %v1238, 1
  %v1261 = vtanh.pop %v1259
  %v1262 = vmul.f32 %v1257, %v1170
  %v1263 = vmul.f32 %v1257, %v1261
  %1265 = vrot.lane.b32.xlu0 %v1263, 64
  %v1266 = vpop.permute.xlu0 %1265
  %v1268 = vadd.f32 %v1262, %v1266
  %v1269 = vtanh.pop %v1268
  %1271 = vrot.lane.b32.xlu0 %v1257, 64
  %v1272 = vpop.permute.xlu0 %1271
  %v1273 = vrot.slane %v1272, 1
  %1276 = vrot.lane.b32.xlu0 %v1269, 64
  %v1277 = vpop.permute.xlu0 %1276
  %v1279 = vmul.f32 %v1273, %v1277
  %1280 = vst.msk [vmem:[#allocation7 + $0x2] sm:$0x1] %vm149, %v1279
  %v1282 = vperm.slane %v1279, 0
  %1283 = vrot.lane.b32.xlu0 %v1282, 96
  %v1284 = vpop.permute.xlu0 %1283
  %1286 = vst.msk [vmem:[#allocation8 + $0x5] sm:$0x1] %vm149, %v1284
  %s1287 = scalar_lea.vmem [#allocation6], 3
  %v1288 = vld [vmem:[%s1287] ss:$8 sm:$0x3]
  %v1289 = vsel %vm53, %v1279, 0
  %1291 = vmatpush.msra.mxu0 0.0
  %1292 = vmatpush.msra.mxu0 0.0
  %1293 = vmatpush.msra.mxu0 0.0
  %1294 = vmatpush.msra.mxu0 0.0
  %1295 = vmatpush.msra.mxu0 0.0
  %1296 = vmatpush.msra.mxu0 0.0
  %1297 = vmatpush.msra.mxu0 0.0
  %1298 = vmatpush.msra.mxu0 0.0
  %1299 = vmatpush.msra.mxu0 %v983
  %1300 = vmatpush.msra.mxu0 %v981
  %1301 = vmatpush.msra.mxu0 %v979
  %1302 = vmatpush.msra.mxu0 %v977
  %1303 = vmatpush.msra.mxu0 %v975
  %1304 = vmatpush.msra.mxu0 %v973
  %1305 = vmatpush.msra.mxu0 %v971
  %1306 = vmatpush.msra.mxu0 %v969
  %1307 = vmatmul.f32.gmra.mxu0 %v1289
  %v1308 = vpop.f32.mrf.mxu0
  %v1309 = vadd.f32 0.0, %v1308
  %1310 = vdwg.mxu0
  %1311 = vmatpush.msra.mxu0 0.0
  %1312 = vmatpush.msra.mxu0 0.0
  %1313 = vmatpush.msra.mxu0 0.0
  %1314 = vmatpush.msra.mxu0 0.0
  %1315 = vmatpush.msra.mxu0 0.0
  %1316 = vmatpush.msra.mxu0 0.0
  %1317 = vmatpush.msra.mxu0 0.0
  %1318 = vmatpush.msra.mxu0 0.0
  %1319 = vmatpush.msra.mxu0 %v984
  %1320 = vmatpush.msra.mxu0 %v982
  %1321 = vmatpush.msra.mxu0 %v980
  %1322 = vmatpush.msra.mxu0 %v978
  %1323 = vmatpush.msra.mxu0 %v976
  %1324 = vmatpush.msra.mxu0 %v974
  %1325 = vmatpush.msra.mxu0 %v972
  %1326 = vmatpush.msra.mxu0 %v970
  %1327 = vmatmul.f32.gmra.mxu0 %v1289
  %v1328 = vpop.f32.mrf.mxu0
  %v1329 = vadd.f32 0.0, %v1328
  %1330 = vdwg.mxu0
  %v1333 = vrot.slane %v1329, 7
  %v1334 = vsel %vm100, %v1309, %v1333
  %v1336 = vadd.f32 %v1288, %v1334
  %v1337 = vxor.u32 %v1336, 2147483648
  %v1338 = vmul.f32 %v1337, 1.442695
  %v1339 = vpow.pop %v1338
  %v1340 = vadd.f32 %v1339, 1.0
  %v1341 = vrcp.pop %v1340
  %v1342 = vmul.f32 %v1340, %v1341
  %v1343 = vsub.f32 1.0, %v1342
  %v1344 = vmul.f32 %v1341, %v1343
  %v1345 = vadd.f32 %v1341, %v1344
  %vm1346 = vweird.f32 %v1340
  %vm1347 = vweird.f32 %v1341
  %vm1348 = vmor %vm1346, %vm1347
  %v1349 = vsel %vm1348, %v1341, %v1345
  %v1350 = vand.u32 2147483647, %v1340
  %vm1351 = vcmp.eq.f32.partialorder %v1350, 8.507059e+37
  %v1352 = vand.u32 %v1340, 2147483648
  %v1353 = vor.u32 1.1754944e-38, %v1352
  %v1354 = vsel %vm1351, %v1353, %v1349
  %v1355 = vmul.f32 1.0, %v1354
  %v1357 = vrot.slane %v1336, 1
  %v1359 = vtanh.pop %v1357
  %v1360 = vmul.f32 %v1355, %v1268
  %v1361 = vmul.f32 %v1355, %v1359
  %1363 = vrot.lane.b32.xlu0 %v1361, 64
  %v1364 = vpop.permute.xlu0 %1363
  %v1366 = vadd.f32 %v1360, %v1364
  %v1367 = vtanh.pop %v1366
  %1369 = vrot.lane.b32.xlu0 %v1355, 64
  %v1370 = vpop.permute.xlu0 %1369
  %v1371 = vrot.slane %v1370, 1
  %1374 = vrot.lane.b32.xlu0 %v1367, 64
  %v1375 = vpop.permute.xlu0 %1374
  %v1377 = vmul.f32 %v1371, %v1375
  %1378 = vst.msk [vmem:[#allocation7 + $0x3] sm:$0x1] %vm149, %v1377
  %v1380 = vperm.slane %v1377, 0
  %1381 = vrot.lane.b32.xlu0 %v1380, 96
  %v1382 = vpop.permute.xlu0 %1381
  %1384 = vst.msk [vmem:[#allocation8 + $0x4] sm:$0x1] %vm149, %v1382
  %s1385 = scalar_lea.vmem [#allocation6], 4
  %v1386 = vld [vmem:[%s1385] ss:$8 sm:$0x3]
  %v1387 = vsel %vm53, %v1377, 0
  %1389 = vmatpush.msra.mxu0 0.0
  %1390 = vmatpush.msra.mxu0 0.0
  %1391 = vmatpush.msra.mxu0 0.0
  %1392 = vmatpush.msra.mxu0 0.0
  %1393 = vmatpush.msra.mxu0 0.0
  %1394 = vmatpush.msra.mxu0 0.0
  %1395 = vmatpush.msra.mxu0 0.0
  %1396 = vmatpush.msra.mxu0 0.0
  %1397 = vmatpush.msra.mxu0 %v983
  %1398 = vmatpush.msra.mxu0 %v981
  %1399 = vmatpush.msra.mxu0 %v979
  %1400 = vmatpush.msra.mxu0 %v977
  %1401 = vmatpush.msra.mxu0 %v975
  %1402 = vmatpush.msra.mxu0 %v973
  %1403 = vmatpush.msra.mxu0 %v971
  %1404 = vmatpush.msra.mxu0 %v969
  %1405 = vmatmul.f32.gmra.mxu0 %v1387
  %v1406 = vpop.f32.mrf.mxu0
  %v1407 = vadd.f32 0.0, %v1406
  %1408 = vdwg.mxu0
  %1409 = vmatpush.msra.mxu0 0.0
  %1410 = vmatpush.msra.mxu0 0.0
  %1411 = vmatpush.msra.mxu0 0.0
  %1412 = vmatpush.msra.mxu0 0.0
  %1413 = vmatpush.msra.mxu0 0.0
  %1414 = vmatpush.msra.mxu0 0.0
  %1415 = vmatpush.msra.mxu0 0.0
  %1416 = vmatpush.msra.mxu0 0.0
  %1417 = vmatpush.msra.mxu0 %v984
  %1418 = vmatpush.msra.mxu0 %v982
  %1419 = vmatpush.msra.mxu0 %v980
  %1420 = vmatpush.msra.mxu0 %v978
  %1421 = vmatpush.msra.mxu0 %v976
  %1422 = vmatpush.msra.mxu0 %v974
  %1423 = vmatpush.msra.mxu0 %v972
  %1424 = vmatpush.msra.mxu0 %v970
  %1425 = vmatmul.f32.gmra.mxu0 %v1387
  %v1426 = vpop.f32.mrf.mxu0
  %v1427 = vadd.f32 0.0, %v1426
  %1428 = vdwg.mxu0
  %v1431 = vrot.slane %v1427, 7
  %v1432 = vsel %vm100, %v1407, %v1431
  %v1434 = vadd.f32 %v1386, %v1432
  %v1435 = vxor.u32 %v1434, 2147483648
  %v1436 = vmul.f32 %v1435, 1.442695
  %v1437 = vpow.pop %v1436
  %v1438 = vadd.f32 %v1437, 1.0
  %v1439 = vrcp.pop %v1438
  %v1440 = vmul.f32 %v1438, %v1439
  %v1441 = vsub.f32 1.0, %v1440
  %v1442 = vmul.f32 %v1439, %v1441
  %v1443 = vadd.f32 %v1439, %v1442
  %vm1444 = vweird.f32 %v1438
  %vm1445 = vweird.f32 %v1439
  %vm1446 = vmor %vm1444, %vm1445
  %v1447 = vsel %vm1446, %v1439, %v1443
  %v1448 = vand.u32 2147483647, %v1438
  %vm1449 = vcmp.eq.f32.partialorder %v1448, 8.507059e+37
  %v1450 = vand.u32 %v1438, 2147483648
  %v1451 = vor.u32 1.1754944e-38, %v1450
  %v1452 = vsel %vm1449, %v1451, %v1447
  %v1453 = vmul.f32 1.0, %v1452
  %v1455 = vrot.slane %v1434, 1
  %v1457 = vtanh.pop %v1455
  %v1458 = vmul.f32 %v1453, %v1366
  %v1459 = vmul.f32 %v1453, %v1457
  %1461 = vrot.lane.b32.xlu0 %v1459, 64
  %v1462 = vpop.permute.xlu0 %1461
  %v1464 = vadd.f32 %v1458, %v1462
  %v1465 = vtanh.pop %v1464
  %1467 = vrot.lane.b32.xlu0 %v1453, 64
  %v1468 = vpop.permute.xlu0 %1467
  %v1469 = vrot.slane %v1468, 1
  %1472 = vrot.lane.b32.xlu0 %v1465, 64
  %v1473 = vpop.permute.xlu0 %1472
  %v1475 = vmul.f32 %v1469, %v1473
  %1476 = vst.msk [vmem:[#allocation7 + $0x4] sm:$0x1] %vm149, %v1475
  %v1478 = vperm.slane %v1475, 0
  %1479 = vrot.lane.b32.xlu0 %v1478, 96
  %v1480 = vpop.permute.xlu0 %1479
  %1482 = vst.msk [vmem:[#allocation8 + $0x3] sm:$0x1] %vm149, %v1480
  %s1483 = scalar_lea.vmem [#allocation6], 5
  %v1484 = vld [vmem:[%s1483] ss:$8 sm:$0x3]
  %v1485 = vsel %vm53, %v1475, 0
  %1487 = vmatpush.msra.mxu0 0.0
  %1488 = vmatpush.msra.mxu0 0.0
  %1489 = vmatpush.msra.mxu0 0.0
  %1490 = vmatpush.msra.mxu0 0.0
  %1491 = vmatpush.msra.mxu0 0.0
  %1492 = vmatpush.msra.mxu0 0.0
  %1493 = vmatpush.msra.mxu0 0.0
  %1494 = vmatpush.msra.mxu0 0.0
  %1495 = vmatpush.msra.mxu0 %v983
  %1496 = vmatpush.msra.mxu0 %v981
  %1497 = vmatpush.msra.mxu0 %v979
  %1498 = vmatpush.msra.mxu0 %v977
  %1499 = vmatpush.msra.mxu0 %v975
  %1500 = vmatpush.msra.mxu0 %v973
  %1501 = vmatpush.msra.mxu0 %v971
  %1502 = vmatpush.msra.mxu0 %v969
  %1503 = vmatmul.f32.gmra.mxu0 %v1485
  %v1504 = vpop.f32.mrf.mxu0
  %v1505 = vadd.f32 0.0, %v1504
  %1506 = vdwg.mxu0
  %1507 = vmatpush.msra.mxu0 0.0
  %1508 = vmatpush.msra.mxu0 0.0
  %1509 = vmatpush.msra.mxu0 0.0
  %1510 = vmatpush.msra.mxu0 0.0
  %1511 = vmatpush.msra.mxu0 0.0
  %1512 = vmatpush.msra.mxu0 0.0
  %1513 = vmatpush.msra.mxu0 0.0
  %1514 = vmatpush.msra.mxu0 0.0
  %1515 = vmatpush.msra.mxu0 %v984
  %1516 = vmatpush.msra.mxu0 %v982
  %1517 = vmatpush.msra.mxu0 %v980
  %1518 = vmatpush.msra.mxu0 %v978
  %1519 = vmatpush.msra.mxu0 %v976
  %1520 = vmatpush.msra.mxu0 %v974
  %1521 = vmatpush.msra.mxu0 %v972
  %1522 = vmatpush.msra.mxu0 %v970
  %1523 = vmatmul.f32.gmra.mxu0 %v1485
  %v1524 = vpop.f32.mrf.mxu0
  %v1525 = vadd.f32 0.0, %v1524
  %1526 = vdwg.mxu0
  %v1529 = vrot.slane %v1525, 7
  %v1530 = vsel %vm100, %v1505, %v1529
  %v1532 = vadd.f32 %v1484, %v1530
  %v1533 = vxor.u32 %v1532, 2147483648
  %v1534 = vmul.f32 %v1533, 1.442695
  %v1535 = vpow.pop %v1534
  %v1536 = vadd.f32 %v1535, 1.0
  %v1537 = vrcp.pop %v1536
  %v1538 = vmul.f32 %v1536, %v1537
  %v1539 = vsub.f32 1.0, %v1538
  %v1540 = vmul.f32 %v1537, %v1539
  %v1541 = vadd.f32 %v1537, %v1540
  %vm1542 = vweird.f32 %v1536
  %vm1543 = vweird.f32 %v1537
  %vm1544 = vmor %vm1542, %vm1543
  %v1545 = vsel %vm1544, %v1537, %v1541
  %v1546 = vand.u32 2147483647, %v1536
  %vm1547 = vcmp.eq.f32.partialorder %v1546, 8.507059e+37
  %v1548 = vand.u32 %v1536, 2147483648
  %v1549 = vor.u32 1.1754944e-38, %v1548
  %v1550 = vsel %vm1547, %v1549, %v1545
  %v1551 = vmul.f32 1.0, %v1550
  %v1553 = vrot.slane %v1532, 1
  %v1555 = vtanh.pop %v1553
  %v1556 = vmul.f32 %v1551, %v1464
  %v1557 = vmul.f32 %v1551, %v1555
  %1559 = vrot.lane.b32.xlu0 %v1557, 64
  %v1560 = vpop.permute.xlu0 %1559
  %v1562 = vadd.f32 %v1556, %v1560
  %v1563 = vtanh.pop %v1562
  %1565 = vrot.lane.b32.xlu0 %v1551, 64
  %v1566 = vpop.permute.xlu0 %1565
  %v1567 = vrot.slane %v1566, 1
  %1570 = vrot.lane.b32.xlu0 %v1563, 64
  %v1571 = vpop.permute.xlu0 %1570
  %v1573 = vmul.f32 %v1567, %v1571
  %1574 = vst.msk [vmem:[#allocation7 + $0x5] sm:$0x1] %vm149, %v1573
  %v1576 = vperm.slane %v1573, 0
  %1577 = vrot.lane.b32.xlu0 %v1576, 96
  %v1578 = vpop.permute.xlu0 %1577
  %1580 = vst.msk [vmem:[#allocation8 + $0x2] sm:$0x1] %vm149, %v1578
  %s1581 = scalar_lea.vmem [#allocation6], 6
  %v1582 = vld [vmem:[%s1581] ss:$8 sm:$0x3]
  %v1583 = vsel %vm53, %v1573, 0
  %1585 = vmatpush.msra.mxu0 0.0
  %1586 = vmatpush.msra.mxu0 0.0
  %1587 = vmatpush.msra.mxu0 0.0
  %1588 = vmatpush.msra.mxu0 0.0
  %1589 = vmatpush.msra.mxu0 0.0
  %1590 = vmatpush.msra.mxu0 0.0
  %1591 = vmatpush.msra.mxu0 0.0
  %1592 = vmatpush.msra.mxu0 0.0
  %1593 = vmatpush.msra.mxu0 %v983
  %1594 = vmatpush.msra.mxu0 %v981
  %1595 = vmatpush.msra.mxu0 %v979
  %1596 = vmatpush.msra.mxu0 %v977
  %1597 = vmatpush.msra.mxu0 %v975
  %1598 = vmatpush.msra.mxu0 %v973
  %1599 = vmatpush.msra.mxu0 %v971
  %1600 = vmatpush.msra.mxu0 %v969
  %1601 = vmatmul.f32.gmra.mxu0 %v1583
  %v1602 = vpop.f32.mrf.mxu0
  %v1603 = vadd.f32 0.0, %v1602
  %1604 = vdwg.mxu0
  %1605 = vmatpush.msra.mxu0 0.0
  %1606 = vmatpush.msra.mxu0 0.0
  %1607 = vmatpush.msra.mxu0 0.0
  %1608 = vmatpush.msra.mxu0 0.0
  %1609 = vmatpush.msra.mxu0 0.0
  %1610 = vmatpush.msra.mxu0 0.0
  %1611 = vmatpush.msra.mxu0 0.0
  %1612 = vmatpush.msra.mxu0 0.0
  %1613 = vmatpush.msra.mxu0 %v984
  %1614 = vmatpush.msra.mxu0 %v982
  %1615 = vmatpush.msra.mxu0 %v980
  %1616 = vmatpush.msra.mxu0 %v978
  %1617 = vmatpush.msra.mxu0 %v976
  %1618 = vmatpush.msra.mxu0 %v974
  %1619 = vmatpush.msra.mxu0 %v972
  %1620 = vmatpush.msra.mxu0 %v970
  %1621 = vmatmul.f32.gmra.mxu0 %v1583
  %v1622 = vpop.f32.mrf.mxu0
  %v1623 = vadd.f32 0.0, %v1622
  %1624 = vdwg.mxu0
  %v1627 = vrot.slane %v1623, 7
  %v1628 = vsel %vm100, %v1603, %v1627
  %v1630 = vadd.f32 %v1582, %v1628
  %v1631 = vxor.u32 %v1630, 2147483648
  %v1632 = vmul.f32 %v1631, 1.442695
  %v1633 = vpow.pop %v1632
  %v1634 = vadd.f32 %v1633, 1.0
  %v1635 = vrcp.pop %v1634
  %v1636 = vmul.f32 %v1634, %v1635
  %v1637 = vsub.f32 1.0, %v1636
  %v1638 = vmul.f32 %v1635, %v1637
  %v1639 = vadd.f32 %v1635, %v1638
  %vm1640 = vweird.f32 %v1634
  %vm1641 = vweird.f32 %v1635
  %vm1642 = vmor %vm1640, %vm1641
  %v1643 = vsel %vm1642, %v1635, %v1639
  %v1644 = vand.u32 2147483647, %v1634
  %vm1645 = vcmp.eq.f32.partialorder %v1644, 8.507059e+37
  %v1646 = vand.u32 %v1634, 2147483648
  %v1647 = vor.u32 1.1754944e-38, %v1646
  %v1648 = vsel %vm1645, %v1647, %v1643
  %v1649 = vmul.f32 1.0, %v1648
  %v1651 = vrot.slane %v1630, 1
  %v1653 = vtanh.pop %v1651
  %v1654 = vmul.f32 %v1649, %v1562
  %v1655 = vmul.f32 %v1649, %v1653
  %1657 = vrot.lane.b32.xlu0 %v1655, 64
  %v1658 = vpop.permute.xlu0 %1657
  %v1660 = vadd.f32 %v1654, %v1658
  %v1661 = vtanh.pop %v1660
  %1663 = vrot.lane.b32.xlu0 %v1649, 64
  %v1664 = vpop.permute.xlu0 %1663
  %v1665 = vrot.slane %v1664, 1
  %1668 = vrot.lane.b32.xlu0 %v1661, 64
  %v1669 = vpop.permute.xlu0 %1668
  %v1671 = vmul.f32 %v1665, %v1669
  %1672 = vst.msk [vmem:[#allocation7 + $0x6] sm:$0x1] %vm149, %v1671
  %v1674 = vperm.slane %v1671, 0
  %1675 = vrot.lane.b32.xlu0 %v1674, 96
  %v1676 = vpop.permute.xlu0 %1675
  %1678 = vst.msk [vmem:[#allocation8 + $0x1] sm:$0x1] %vm149, %v1676
  %s1679 = scalar_lea.vmem [#allocation6], 7
  %v1680 = vld [vmem:[%s1679] ss:$8 sm:$0x3]
  %v1681 = vsel %vm53, %v1671, 0
  %1683 = vmatpush.msra.mxu0 0.0
  %1684 = vmatpush.msra.mxu0 0.0
  %1685 = vmatpush.msra.mxu0 0.0
  %1686 = vmatpush.msra.mxu0 0.0
  %1687 = vmatpush.msra.mxu0 0.0
  %1688 = vmatpush.msra.mxu0 0.0
  %1689 = vmatpush.msra.mxu0 0.0
  %1690 = vmatpush.msra.mxu0 0.0
  %1691 = vmatpush.msra.mxu0 %v983
  %1692 = vmatpush.msra.mxu0 %v981
  %1693 = vmatpush.msra.mxu0 %v979
  %1694 = vmatpush.msra.mxu0 %v977
  %1695 = vmatpush.msra.mxu0 %v975
  %1696 = vmatpush.msra.mxu0 %v973
  %1697 = vmatpush.msra.mxu0 %v971
  %1698 = vmatpush.msra.mxu0 %v969
  %1699 = vmatmul.f32.gmra.mxu0 %v1681
  %v1700 = vpop.f32.mrf.mxu0
  %v1701 = vadd.f32 0.0, %v1700
  %1702 = vdwg.mxu0
  %1703 = vmatpush.msra.mxu0 0.0
  %1704 = vmatpush.msra.mxu0 0.0
  %1705 = vmatpush.msra.mxu0 0.0
  %1706 = vmatpush.msra.mxu0 0.0
  %1707 = vmatpush.msra.mxu0 0.0
  %1708 = vmatpush.msra.mxu0 0.0
  %1709 = vmatpush.msra.mxu0 0.0
  %1710 = vmatpush.msra.mxu0 0.0
  %1711 = vmatpush.msra.mxu0 %v984
  %1712 = vmatpush.msra.mxu0 %v982
  %1713 = vmatpush.msra.mxu0 %v980
  %1714 = vmatpush.msra.mxu0 %v978
  %1715 = vmatpush.msra.mxu0 %v976
  %1716 = vmatpush.msra.mxu0 %v974
  %1717 = vmatpush.msra.mxu0 %v972
  %1718 = vmatpush.msra.mxu0 %v970
  %1719 = vmatmul.f32.gmra.mxu0 %v1681
  %v1720 = vpop.f32.mrf.mxu0
  %v1721 = vadd.f32 0.0, %v1720
  %1722 = vdwg.mxu0
  %v1725 = vrot.slane %v1721, 7
  %v1726 = vsel %vm100, %v1701, %v1725
  %v1728 = vadd.f32 %v1680, %v1726
  %v1729 = vxor.u32 %v1728, 2147483648
  %v1730 = vmul.f32 %v1729, 1.442695
  %v1731 = vpow.pop %v1730
  %v1732 = vadd.f32 %v1731, 1.0
  %v1733 = vrcp.pop %v1732
  %v1734 = vmul.f32 %v1732, %v1733
  %v1735 = vsub.f32 1.0, %v1734
  %v1736 = vmul.f32 %v1733, %v1735
  %v1737 = vadd.f32 %v1733, %v1736
  %vm1738 = vweird.f32 %v1732
  %vm1739 = vweird.f32 %v1733
  %vm1740 = vmor %vm1738, %vm1739
  %v1741 = vsel %vm1740, %v1733, %v1737
  %v1742 = vand.u32 2147483647, %v1732
  %vm1743 = vcmp.eq.f32.partialorder %v1742, 8.507059e+37
  %v1744 = vand.u32 %v1732, 2147483648
  %v1745 = vor.u32 1.1754944e-38, %v1744
  %v1746 = vsel %vm1743, %v1745, %v1741
  %v1747 = vmul.f32 1.0, %v1746
  %v1749 = vrot.slane %v1728, 1
  %v1751 = vtanh.pop %v1749
  %v1752 = vmul.f32 %v1747, %v1660
  %v1753 = vmul.f32 %v1747, %v1751
  %1755 = vrot.lane.b32.xlu0 %v1753, 64
  %v1756 = vpop.permute.xlu0 %1755
  %v1758 = vadd.f32 %v1752, %v1756
  %v1759 = vtanh.pop %v1758
  %1761 = vrot.lane.b32.xlu0 %v1747, 64
  %v1762 = vpop.permute.xlu0 %1761
  %v1763 = vrot.slane %v1762, 1
  %1766 = vrot.lane.b32.xlu0 %v1759, 64
  %v1767 = vpop.permute.xlu0 %1766
  %v1769 = vmul.f32 %v1763, %v1767
  %1770 = vst.msk [vmem:[#allocation7 + $0x7] sm:$0x1] %vm149, %v1769
  %v1772 = vperm.slane %v1769, 0
  %1773 = vrot.lane.b32.xlu0 %v1772, 96
  %v1774 = vpop.permute.xlu0 %1773
  %1776 = vst.msk [vmem:[#allocation8] sm:$0x1] %vm149, %v1774
  %s1777 = scalar_lea.vmem %s9, 1
  %1778 = vst.msk [vmem:[%s1777] sm:$0x1] %vm859, %v1769
  %v1780 = vperm.slane %v1758, 0
  %1781 = vrot.lane.b32.xlu0 %v1780, 64
  %v1782 = vpop.permute.xlu0 %1781
  %s1784 = scalar_lea.vmem %s10, 1
  %1785 = vst.msk [vmem:[%s1784] sm:$0x1] %vm859, %v1782
  %v1786 = vld [vmem:[%s6] sm:$0x1]
  %v1787 = vld [vmem:[#allocation7] sm:$0xff]
  %v1789 = vperm.slane %v1786, 0
  %v1791 = vmul.f32 %v1787, %v1789
  %v1792 = vsel %vm883, %v1791, 0.0
  %1793 = vadd.xlane.f32.xlu0 %v1792
  %v1794 = vpop.xlane.xlu0 %1793
  %v1795 = vld [vmem:[#allocation8] sm:$0xff]
  %1796 = vrot.lane.b32.xlu0 %v1789, 96
  %v1797 = vpop.permute.xlu0 %1796
  %v1799 = vmul.f32 %v1795, %v1797
  %v1800 = vsel %vm883, %v1799, 0.0
  %1801 = vadd.xlane.f32.xlu0 %v1800
  %v1802 = vpop.xlane.xlu0 %1801
  %v1803 = vadd.f32 %v1794, %v1802
  %v1804 = vld [vmem:[#allocation9] sm:$0x1]
  %v1806 = vperm.slane %v1804, 0
  %v1808 = vadd.f32 %v1803, %v1806
  %vm1809 = vcmask 7168
  %1810 = vst.msk [vmem:[%s8] sm:$0xff] %vm1809, %v1808
  // Predicated region
  $region34: #{rnn_gru_lstm_forward.1} parent=0 // pred_check
    _
  $region35: #{rnn_gru_lstm_forward.1} parent=0 // pred_check_branch
    %1812 = sbr.rel (0) target = $region37
  $region36: #{rnn_gru_lstm_forward.1} parent=0 // pred_region
    _
  $region37: #{rnn_gru_lstm_forward.1} parent=0 // pred_fallthru
    _
  // Predicated region
  $region38: #{rnn_gru_lstm_forward.1} parent=0 // pred_check
    _
  $region39: #{rnn_gru_lstm_forward.1} parent=0 // pred_check_branch
    %1814 = sbr.rel (0) target = $region41
  $region40: #{rnn_gru_lstm_forward.1} parent=0 // pred_region
    _
  $region41: #{rnn_gru_lstm_forward.1} parent=0 // pred_fallthru
    _
  // Predicated region
  $region42: #{rnn_gru_lstm_forward.1} parent=0 // pred_check
    _
  $region43: #{rnn_gru_lstm_forward.1} parent=0 // pred_check_branch
    %1816 = sbr.rel (0) target = $region45
  $region44: #{rnn_gru_lstm_forward.1} parent=0 // pred_region
    _
  $region45: #{rnn_gru_lstm_forward.1} parent=0 // pred_fallthru
    _
  // Predicated region
  $region46: #{rnn_gru_lstm_forward.1} parent=0 // pred_check
    _
  $region47: #{rnn_gru_lstm_forward.1} parent=0 // pred_check_branch
    %1818 = sbr.rel (0) target = $region49
  $region48: #{rnn_gru_lstm_forward.1} parent=0 // pred_region
    _
  $region49: #{rnn_gru_lstm_forward.1} parent=0 // pred_fallthru
    _
  // Predicated region
  $region50: #{rnn_gru_lstm_forward.1} parent=0 // pred_check
    _
  $region51: #{rnn_gru_lstm_forward.1} parent=0 // pred_check_branch
    %1820 = sbr.rel (0) target = $region53
  $region52: #{rnn_gru_lstm_forward.1} parent=0 // pred_region
    _
  $region53: #{rnn_gru_lstm_forward.1} parent=0 // pred_fallthru
    _
  // Predicated region
  $region54: #{rnn_gru_lstm_forward.1} parent=0 // pred_check
    _
  $region55: #{rnn_gru_lstm_forward.1} parent=0 // pred_check_branch
    %1822 = sbr.rel (0) target = $region57
  $region56: #{rnn_gru_lstm_forward.1} parent=0 // pred_region
    _
  $region57: #{rnn_gru_lstm_forward.1} parent=0 // pred_fallthru
    _

</llo_original>
